<compile_context>
chip_gen: v6e
topology: v6e:2x2x1
jax: 0.10.0
libtpu: 0.0.40
codegen_flags: <defaults>
</compile_context>

<pallas_src>
import functools

import jax
import jax.numpy as jnp
from jax.experimental import pallas as pl
from jax.experimental.pallas import tpu as pltpu


# ------------------------------ kernel helpers ------------------------------

def _layer_norm(y, gamma, beta, eps=1e-12):
    mu = jnp.mean(y, axis=-1, keepdims=True)
    var = jnp.mean(jnp.square(y - mu), axis=-1, keepdims=True)
    return (y - mu) * jax.lax.rsqrt(var + eps) * gamma + beta


def _gelu_tanh(y):
    # TODO(synk): HF BERT's default activation is the exact erf GELU; the
    # tanh approximation is used here (EUP-friendly on TPU).
    c = jnp.float32(0.7978845608028654)  # sqrt(2/pi)
    return 0.5 * y * (1.0 + jnp.tanh(c * (y + 0.044715 * y * y * y)))


# ------------------------------ fused encoder -------------------------------

def _encoder_kernel(n_heads, head_dim,
                    x_emb_ref, emb_g_ref, emb_b_ref,
                    wqkv_ref, bqkv_ref, wo_ref, bo_ref, ln1g_ref, ln1b_ref,
                    w1_ref, b1_ref, w2_ref, b2_ref, ln2g_ref, ln2b_ref,
                    o_ref, x_scr):
    """grid = (B, L): batch ('parallel') x layer ('arbitrary', carried in x_scr)."""
    layer = pl.program_id(1)
    H = x_scr.shape[-1]
    bf16 = jnp.bfloat16
    f32 = jnp.float32

    # First layer step: embedding LayerNorm seeds the carried hidden state
    # (no zero-residual tensor is materialized).
    @pl.when(layer == 0)
    def _():
        x_scr[...] = _layer_norm(x_emb_ref[0].astype(f32),
                                 emb_g_ref[...], emb_b_ref[...])

    x = x_scr[...]                                              # (S, H) f32

    # ---- fused QKV projection: one (H, 3H) matmul, bf16 MXU / f32 acc ----
    qkv = jnp.dot(x.astype(bf16), wqkv_ref[0],
                  preferred_element_type=f32) + bqkv_ref[0]     # (S, 3H)

    # ---- multi-head self-attention with fused output projection ----
    wo = wo_ref[0]                                              # (H, H) bf16
    scale = float(head_dim) ** -0.5
    proj = None
    for h in range(n_heads):                                    # static unroll
        lo = h * head_dim
        q = qkv[:, lo:lo + head_dim]
        k = qkv[:, H + lo:H + lo + head_dim]
        v = qkv[:, 2 * H + lo:2 * H + lo + head_dim]
        # q @ k^T without an explicit transpose of k
        s = jax.lax.dot_general(
            q.astype(bf16), k.astype(bf16),
            dimension_numbers=(((1,), (1,)), ((), ())),
            preferred_element_type=f32) * scale                 # (S, S) f32
        m = jnp.max(s, axis=-1, keepdims=True)
        p = jnp.exp(s - m)
        denom = jnp.sum(p, axis=-1, keepdims=True)
        p = p * pl.reciprocal(denom, approx=True)               # EUP slot
        o_h = jnp.dot(p.astype(bf16), v.astype(bf16),
                      preferred_element_type=f32)               # (S, hd)
        # concat(heads) @ Wo == sum_h head_h @ Wo[h*hd:(h+1)*hd, :]
        contrib = jnp.dot(o_h.astype(bf16), wo[lo:lo + head_dim, :],
                          preferred_element_type=f32)           # (S, H)
        proj = contrib if proj is None else proj + contrib
    proj = proj + bo_ref[0]

    # ---- residual + LayerNorm 1 ----
    x1 = _layer_norm(proj + x, ln1g_ref[0], ln1b_ref[0])

    # ---- FFN (w1 + GELU + w2) + residual + LayerNorm 2, fully fused ----
    h1 = jnp.dot(x1.astype(bf16), w1_ref[0],
                 preferred_element_type=f32) + b1_ref[0]
    h1 = _gelu_tanh(h1)
    h2 = jnp.dot(h1.astype(bf16), w2_ref[0],
                 preferred_element_type=f32) + b2_ref[0]
    x2 = _layer_norm(h2 + x1, ln2g_ref[0], ln2b_ref[0])

    x_scr[...] = x2

    # Last layer step: fused mean-pool over the sequence axis (no extra
    # HBM round-trip / separate pooling kernel).
    @pl.when(layer == pl.num_programs(1) - 1)
    def _():
        o_ref[0] = jnp.mean(x2, axis=0, keepdims=True)


# ------------------------- model params & forward ---------------------------

def _normal(key, shape, std=0.02):
    return std * jax.random.normal(key, shape, dtype=jnp.float32)


def init_params(key, vocab, max_pos, H, ffn, n_layers):
    # TODO(synk): AutoModel.from_pretrained loads a real checkpoint; synthetic
    # deterministic weights with the same structure are used here instead.
    ks = jax.random.split(key, 2 + 6 * n_layers)
    p = {
        "tok_emb": _normal(ks[0], (vocab, H)),
        "pos_emb": _normal(ks[1], (max_pos, H)),
        "emb_ln_g": jnp.ones((1, H), jnp.float32),
        "emb_ln_b": jnp.zeros((1, H), jnp.float32),
    }
    wqkv, wo, w1, w2 = [], [], [], []
    i = 2
    for _ in range(n_layers):
        kq, kk, kv, ko, k1, k2 = ks[i:i + 6]
        i += 6
        wqkv.append(jnp.concatenate(
            [_normal(kq, (H, H)), _normal(kk, (H, H)), _normal(kv, (H, H))],
            axis=-1))
        wo.append(_normal(ko, (H, H)))
        w1.append(_normal(k1, (H, ffn)))
        w2.append(_normal(k2, (ffn, H)))
    L = n_layers
    p.update({
        # matmul weights feed the MXU -> store bf16; biases / LN params stay f32
        "wqkv": jnp.stack(wqkv).astype(jnp.bfloat16),      # [L, H, 3H]
        "bqkv": jnp.zeros((L, 1, 3 * H), jnp.float32),
        "wo": jnp.stack(wo).astype(jnp.bfloat16),          # [L, H, H]
        "bo": jnp.zeros((L, 1, H), jnp.float32),
        "ln1_g": jnp.ones((L, 1, H), jnp.float32),
        "ln1_b": jnp.zeros((L, 1, H), jnp.float32),
        "w1": jnp.stack(w1).astype(jnp.bfloat16),          # [L, H, F]
        "b1": jnp.zeros((L, 1, ffn), jnp.float32),
        "w2": jnp.stack(w2).astype(jnp.bfloat16),          # [L, F, H]
        "b2": jnp.zeros((L, 1, H), jnp.float32),
        "ln2_g": jnp.ones((L, 1, H), jnp.float32),
        "ln2_b": jnp.zeros((L, 1, H), jnp.float32),
    })
    return p


def _per_layer_spec(arr):
    """Block = one layer's slice; last two dims are full array dims."""
    zeros = (0,) * (arr.ndim - 1)
    return pl.BlockSpec((1,) + arr.shape[1:], lambda b, l: (l,) + zeros)


def section_model_forward(token_ids, params, n_heads):
    B, S = token_ids.shape
    H = params["tok_emb"].shape[-1]
    L = params["wqkv"].shape[0]
    head_dim = H // n_heads

    # Embedding gather is JAX glue (no clean Pallas gather at these shapes).
    x_emb = (params["tok_emb"][token_ids]
             + params["pos_emb"][None, :S, :]).astype(jnp.float32)  # [B, S, H]

    kernel = functools.partial(_encoder_kernel, n_heads, head_dim)

    per_layer_args = ("wqkv", "bqkv", "wo", "bo", "ln1_g", "ln1_b",
                      "w1", "b1", "w2", "b2", "ln2_g", "ln2_b")

    pooled = pl.pallas_call(
        kernel,
        out_shape=jax.ShapeDtypeStruct((B, 1, H), jnp.float32),
        grid=(B, L),
        in_specs=[pl.BlockSpec((1, S, H), lambda b, l: (b, 0, 0)),   # x_emb
                  pl.BlockSpec((1, H), lambda b, l: (0, 0)),          # emb_ln_g
                  pl.BlockSpec((1, H), lambda b, l: (0, 0))]          # emb_ln_b
                 + [_per_layer_spec(params[name]) for name in per_layer_args],
        out_specs=pl.BlockSpec((1, 1, H), lambda b, l: (b, 0, 0)),
        scratch_shapes=[pltpu.VMEM((S, H), jnp.float32)],             # carried x
        compiler_params=pltpu.CompilerParams(
            dimension_semantics=("parallel", "arbitrary")),
    )(x_emb, params["emb_ln_g"], params["emb_ln_b"],
      *[params[name] for name in per_layer_args])

    return pooled.reshape(B, H)


# ---------------------------------- main ------------------------------------

if __name__ == "__main__":
    B, S, H = 2, 8, 32
    N_HEADS, FFN, N_LAYERS = 2, 64, 2
    VOCAB, MAX_POS = 128, 64

    root = jax.random.PRNGKey(0)
    k_params, k_ids = jax.random.split(root)

    params = init_params(k_params, VOCAB, MAX_POS, H, FFN, N_LAYERS)
    token_ids = jax.random.randint(k_ids, (B, S), 0, VOCAB, dtype=jnp.int32)

    fwd = jax.jit(functools.partial(section_model_forward, n_heads=N_HEADS))
    out = jax.block_until_ready(fwd(token_ids, params))

    assert out.shape == (B, H), out.shape
    assert out.dtype == jnp.float32
    assert bool(jnp.all(jnp.isfinite(out)))
    print("KERNEL_OK")
</pallas_src>

<mosaic_0001>
module attributes {stable_mosaic.version = 11 : i64} {
  func.func @_encoder_kernel(%arg0: i32, %arg1: i32, %arg2: memref<1x8x32xf32, #tpu.memory_space<vmem>>, %arg3: memref<1x32xf32, #tpu.memory_space<vmem>>, %arg4: memref<1x32xf32, #tpu.memory_space<vmem>>, %arg5: memref<1x32x96xbf16, #tpu.memory_space<vmem>>, %arg6: memref<1x1x96xf32, #tpu.memory_space<vmem>>, %arg7: memref<1x32x32xbf16, #tpu.memory_space<vmem>>, %arg8: memref<1x1x32xf32, #tpu.memory_space<vmem>>, %arg9: memref<1x1x32xf32, #tpu.memory_space<vmem>>, %arg10: memref<1x1x32xf32, #tpu.memory_space<vmem>>, %arg11: memref<1x32x64xbf16, #tpu.memory_space<vmem>>, %arg12: memref<1x1x64xf32, #tpu.memory_space<vmem>>, %arg13: memref<1x64x32xbf16, #tpu.memory_space<vmem>>, %arg14: memref<1x1x32xf32, #tpu.memory_space<vmem>>, %arg15: memref<1x1x32xf32, #tpu.memory_space<vmem>>, %arg16: memref<1x1x32xf32, #tpu.memory_space<vmem>>, %arg17: memref<1x1x32xf32, #tpu.memory_space<vmem>>, %arg18: memref<8x32xf32, #tpu.memory_space<vmem>>) attributes {dimension_semantics = [#tpu.dimension_semantics<parallel>, #tpu.dimension_semantics<arbitrary>], iteration_bounds = array<i64: 2, 2>, scalar_prefetch = 0 : i64, scratch_operands = 1 : i64, tpu.core_type = #tpu.core_type<tc>, window_params = [{transform_indices = @transform_0, window_bounds = array<i64: 1, 8, 32>}, {pipeline_mode = #tpu.pipeline_mode<synchronous>, transform_indices = @transform_1, window_bounds = array<i64: 1, 32>}, {pipeline_mode = #tpu.pipeline_mode<synchronous>, transform_indices = @transform_2, window_bounds = array<i64: 1, 32>}, {transform_indices = @transform_3, window_bounds = array<i64: 1, 32, 96>}, {transform_indices = @transform_4, window_bounds = array<i64: 1, 1, 96>}, {transform_indices = @transform_5, window_bounds = array<i64: 1, 32, 32>}, {transform_indices = @transform_6, window_bounds = array<i64: 1, 1, 32>}, {transform_indices = @transform_7, window_bounds = array<i64: 1, 1, 32>}, {transform_indices = @transform_8, window_bounds = array<i64: 1, 1, 32>}, {transform_indices = @transform_9, window_bounds = array<i64: 1, 32, 64>}, {transform_indices = @transform_10, window_bounds = array<i64: 1, 1, 64>}, {transform_indices = @transform_11, window_bounds = array<i64: 1, 64, 32>}, {transform_indices = @transform_12, window_bounds = array<i64: 1, 1, 32>}, {transform_indices = @transform_13, window_bounds = array<i64: 1, 1, 32>}, {transform_indices = @transform_14, window_bounds = array<i64: 1, 1, 32>}, {transform_indices = @transform_15, window_bounds = array<i64: 1, 1, 32>}]} {
    %c0_i32 = arith.constant 0 : i32
    %0 = arith.cmpi eq, %arg1, %c0_i32 : i32
    %1 = arith.extui %0 : i1 to i32
    %c0_i32_0 = arith.constant 0 : i32
    %2 = arith.cmpi ne, %1, %c0_i32_0 : i32
    scf.if %2 {
      %c0_69 = arith.constant 0 : index
      %c0_70 = arith.constant 0 : index
      %c0_71 = arith.constant 0 : index
      %154 = vector.load %arg2[%c0_69, %c0_70, %c0_71] : memref<1x8x32xf32, #tpu.memory_space<vmem>>, vector<1x8x32xf32>
      %155 = vector.shape_cast %154 : vector<1x8x32xf32> to vector<8x32xf32>
      %c0_72 = arith.constant 0 : index
      %c0_73 = arith.constant 0 : index
      %156 = vector.load %arg3[%c0_72, %c0_73] : memref<1x32xf32, #tpu.memory_space<vmem>>, vector<1x32xf32>
      %c0_74 = arith.constant 0 : index
      %c0_75 = arith.constant 0 : index
      %157 = vector.load %arg4[%c0_74, %c0_75] : memref<1x32xf32, #tpu.memory_space<vmem>>, vector<1x32xf32>
      %cst_76 = arith.constant dense<0.000000e+00> : vector<8xf32>
      %158 = vector.multi_reduction <add>, %155, %cst_76 [1] : vector<8x32xf32> to vector<8xf32>
      %159 = vector.shape_cast %158 : vector<8xf32> to vector<8x1xf32>
      %cst_77 = arith.constant 3.200000e+01 : f32
      %160 = vector.broadcast %cst_77 : f32 to vector<8x1xf32>
      %161 = arith.divf %159, %160 : vector<8x1xf32>
      %162 = vector.broadcast %161 : vector<8x1xf32> to vector<8x32xf32>
      %163 = arith.subf %155, %162 : vector<8x32xf32>
      %164 = arith.mulf %163, %163 : vector<8x32xf32>
      %cst_78 = arith.constant dense<0.000000e+00> : vector<8xf32>
      %165 = vector.multi_reduction <add>, %164, %cst_78 [1] : vector<8x32xf32> to vector<8xf32>
      %166 = vector.shape_cast %165 : vector<8xf32> to vector<8x1xf32>
      %cst_79 = arith.constant 3.200000e+01 : f32
      %167 = vector.broadcast %cst_79 : f32 to vector<8x1xf32>
      %168 = arith.divf %166, %167 : vector<8x1xf32>
      %169 = vector.broadcast %161 : vector<8x1xf32> to vector<8x32xf32>
      %170 = arith.subf %155, %169 : vector<8x32xf32>
      %cst_80 = arith.constant 9.99999996E-13 : f32
      %171 = vector.broadcast %cst_80 : f32 to vector<8x1xf32>
      %172 = arith.addf %168, %171 : vector<8x1xf32>
      %173 = math.rsqrt %172 : vector<8x1xf32>
      %174 = vector.broadcast %173 : vector<8x1xf32> to vector<8x32xf32>
      %175 = arith.mulf %170, %174 : vector<8x32xf32>
      %176 = vector.broadcast %156 : vector<1x32xf32> to vector<8x32xf32>
      %177 = arith.mulf %175, %176 : vector<8x32xf32>
      %178 = vector.broadcast %157 : vector<1x32xf32> to vector<8x32xf32>
      %179 = arith.addf %177, %178 : vector<8x32xf32>
      %c0_81 = arith.constant 0 : index
      %c0_82 = arith.constant 0 : index
      %180 = vector.load %arg18[%c0_81, %c0_82] : memref<8x32xf32, #tpu.memory_space<vmem>>, vector<8x32xf32>
      tpu.vector_store %arg18[%c0_81, %c0_82], %179 {strides = array<i32>} : memref<8x32xf32, #tpu.memory_space<vmem>>, vector<8x32xf32>,
    } else {
    }
    %c0 = arith.constant 0 : index
    %c0_1 = arith.constant 0 : index
    %3 = vector.load %arg18[%c0, %c0_1] : memref<8x32xf32, #tpu.memory_space<vmem>>, vector<8x32xf32>
    %4 = arith.truncf %3 : vector<8x32xf32> to vector<8x32xbf16>
    %c0_2 = arith.constant 0 : index
    %c0_3 = arith.constant 0 : index
    %c0_4 = arith.constant 0 : index
    %5 = vector.load %arg5[%c0_2, %c0_3, %c0_4] : memref<1x32x96xbf16, #tpu.memory_space<vmem>>, vector<1x32x96xbf16>
    %6 = vector.shape_cast %5 : vector<1x32x96xbf16> to vector<32x96xbf16>
    %cst = arith.constant dense<0.000000e+00> : vector<8x96xf32>
    %7 = tpu.matmul %4, %6, %cst {dimension_numbers = #tpu.dot_dimension_numbers<[1], [0], [0], [1], [0, 0, 1, 1], [], []>} : vector<8x32xbf16>, vector<32x96xbf16>, vector<8x96xf32> -> vector<8x96xf32>
    %c0_5 = arith.constant 0 : index
    %c0_6 = arith.constant 0 : index
    %c0_7 = arith.constant 0 : index
    %8 = vector.load %arg6[%c0_5, %c0_6, %c0_7] : memref<1x1x96xf32, #tpu.memory_space<vmem>>, vector<1x1x96xf32>
    %9 = vector.shape_cast %8 : vector<1x1x96xf32> to vector<1x96xf32>
    %10 = vector.broadcast %9 : vector<1x96xf32> to vector<8x96xf32>
    %11 = arith.addf %7, %10 : vector<8x96xf32>
    %c0_8 = arith.constant 0 : index
    %c0_9 = arith.constant 0 : index
    %c0_10 = arith.constant 0 : index
    %12 = vector.load %arg7[%c0_8, %c0_9, %c0_10] : memref<1x32x32xbf16, #tpu.memory_space<vmem>>, vector<1x32x32xbf16>
    %13 = vector.shape_cast %12 : vector<1x32x32xbf16> to vector<32x32xbf16>
    %14 = vector.extract_strided_slice %11 {offsets = [0, 0], sizes = [8, 16], strides = [1, 1]} : vector<8x96xf32> to vector<8x16xf32>
    %15 = vector.extract_strided_slice %11 {offsets = [0, 32], sizes = [8, 16], strides = [1, 1]} : vector<8x96xf32> to vector<8x16xf32>
    %16 = vector.extract_strided_slice %11 {offsets = [0, 64], sizes = [8, 16], strides = [1, 1]} : vector<8x96xf32> to vector<8x16xf32>
    %17 = arith.truncf %14 : vector<8x16xf32> to vector<8x16xbf16>
    %18 = arith.truncf %15 : vector<8x16xf32> to vector<8x16xbf16>
    %cst_11 = arith.constant dense<0.000000e+00> : vector<8x8xf32>
    %19 = tpu.matmul %17, %18, %cst_11 {dimension_numbers = #tpu.dot_dimension_numbers<[1], [1], [0], [0], [0, 0, 1, 0], [], []>} : vector<8x16xbf16>, vector<8x16xbf16>, vector<8x8xf32> -> vector<8x8xf32>
    %cst_12 = arith.constant 2.500000e-01 : f32
    %20 = vector.broadcast %cst_12 : f32 to vector<8x8xf32>
    %21 = arith.mulf %19, %20 : vector<8x8xf32>
    %cst_13 = arith.constant dense<0xFF800000> : vector<8xf32>
    %22 = vector.multi_reduction <maximumf>, %21, %cst_13 [1] : vector<8x8xf32> to vector<8xf32>
    %23 = vector.shape_cast %22 : vector<8xf32> to vector<8x1xf32>
    %24 = vector.broadcast %23 : vector<8x1xf32> to vector<8x8xf32>
    %25 = arith.subf %21, %24 : vector<8x8xf32>
    %26 = math.exp %25 : vector<8x8xf32>
    %cst_14 = arith.constant dense<0.000000e+00> : vector<8xf32>
    %27 = vector.multi_reduction <add>, %26, %cst_14 [1] : vector<8x8xf32> to vector<8xf32>
    %28 = vector.shape_cast %27 : vector<8xf32> to vector<8x1xf32>
    %29 = tpu.reciprocal %28 {approx = true} : vector<8x1xf32> -> vector<8x1xf32>
    %30 = vector.broadcast %29 : vector<8x1xf32> to vector<8x8xf32>
    %31 = arith.mulf %26, %30 : vector<8x8xf32>
    %32 = arith.truncf %31 : vector<8x8xf32> to vector<8x8xbf16>
    %33 = arith.truncf %16 : vector<8x16xf32> to vector<8x16xbf16>
    %cst_15 = arith.constant dense<0.000000e+00> : vector<8x16xf32>
    %34 = tpu.matmul %32, %33, %cst_15 {dimension_numbers = #tpu.dot_dimension_numbers<[1], [0], [0], [1], [0, 0, 1, 1], [], []>} : vector<8x8xbf16>, vector<8x16xbf16>, vector<8x16xf32> -> vector<8x16xf32>
    %35 = arith.truncf %34 : vector<8x16xf32> to vector<8x16xbf16>
    %36 = vector.extract_strided_slice %13 {offsets = [0, 0], sizes = [16, 32], strides = [1, 1]} : vector<32x32xbf16> to vector<16x32xbf16>
    %cst_16 = arith.constant dense<0.000000e+00> : vector<8x32xf32>
    %37 = tpu.matmul %35, %36, %cst_16 {dimension_numbers = #tpu.dot_dimension_numbers<[1], [0], [0], [1], [0, 0, 1, 1], [], []>} : vector<8x16xbf16>, vector<16x32xbf16>, vector<8x32xf32> -> vector<8x32xf32>
    %38 = vector.extract_strided_slice %11 {offsets = [0, 16], sizes = [8, 16], strides = [1, 1]} : vector<8x96xf32> to vector<8x16xf32>
    %39 = vector.extract_strided_slice %11 {offsets = [0, 48], sizes = [8, 16], strides = [1, 1]} : vector<8x96xf32> to vector<8x16xf32>
    %40 = vector.extract_strided_slice %11 {offsets = [0, 80], sizes = [8, 16], strides = [1, 1]} : vector<8x96xf32> to vector<8x16xf32>
    %41 = arith.truncf %38 : vector<8x16xf32> to vector<8x16xbf16>
    %42 = arith.truncf %39 : vector<8x16xf32> to vector<8x16xbf16>
    %cst_17 = arith.constant dense<0.000000e+00> : vector<8x8xf32>
    %43 = tpu.matmul %41, %42, %cst_17 {dimension_numbers = #tpu.dot_dimension_numbers<[1], [1], [0], [0], [0, 0, 1, 0], [], []>} : vector<8x16xbf16>, vector<8x16xbf16>, vector<8x8xf32> -> vector<8x8xf32>
    %cst_18 = arith.constant 2.500000e-01 : f32
    %44 = vector.broadcast %cst_18 : f32 to vector<8x8xf32>
    %45 = arith.mulf %43, %44 : vector<8x8xf32>
    %cst_19 = arith.constant dense<0xFF800000> : vector<8xf32>
    %46 = vector.multi_reduction <maximumf>, %45, %cst_19 [1] : vector<8x8xf32> to vector<8xf32>
    %47 = vector.shape_cast %46 : vector<8xf32> to vector<8x1xf32>
    %48 = vector.broadcast %47 : vector<8x1xf32> to vector<8x8xf32>
    %49 = arith.subf %45, %48 : vector<8x8xf32>
    %50 = math.exp %49 : vector<8x8xf32>
    %cst_20 = arith.constant dense<0.000000e+00> : vector<8xf32>
    %51 = vector.multi_reduction <add>, %50, %cst_20 [1] : vector<8x8xf32> to vector<8xf32>
    %52 = vector.shape_cast %51 : vector<8xf32> to vector<8x1xf32>
    %53 = tpu.reciprocal %52 {approx = true} : vector<8x1xf32> -> vector<8x1xf32>
    %54 = vector.broadcast %53 : vector<8x1xf32> to vector<8x8xf32>
    %55 = arith.mulf %50, %54 : vector<8x8xf32>
    %56 = arith.truncf %55 : vector<8x8xf32> to vector<8x8xbf16>
    %57 = arith.truncf %40 : vector<8x16xf32> to vector<8x16xbf16>
    %cst_21 = arith.constant dense<0.000000e+00> : vector<8x16xf32>
    %58 = tpu.matmul %56, %57, %cst_21 {dimension_numbers = #tpu.dot_dimension_numbers<[1], [0], [0], [1], [0, 0, 1, 1], [], []>} : vector<8x8xbf16>, vector<8x16xbf16>, vector<8x16xf32> -> vector<8x16xf32>
    %59 = arith.truncf %58 : vector<8x16xf32> to vector<8x16xbf16>
    %60 = vector.extract_strided_slice %13 {offsets = [16, 0], sizes = [16, 32], strides = [1, 1]} : vector<32x32xbf16> to vector<16x32xbf16>
    %cst_22 = arith.constant dense<0.000000e+00> : vector<8x32xf32>
    %61 = tpu.matmul %59, %60, %cst_22 {dimension_numbers = #tpu.dot_dimension_numbers<[1], [0], [0], [1], [0, 0, 1, 1], [], []>} : vector<8x16xbf16>, vector<16x32xbf16>, vector<8x32xf32> -> vector<8x32xf32>
    %62 = arith.addf %37, %61 : vector<8x32xf32>
    %c0_23 = arith.constant 0 : index
    %c0_24 = arith.constant 0 : index
    %c0_25 = arith.constant 0 : index
    %63 = vector.load %arg8[%c0_23, %c0_24, %c0_25] : memref<1x1x32xf32, #tpu.memory_space<vmem>>, vector<1x1x32xf32>
    %64 = vector.shape_cast %63 : vector<1x1x32xf32> to vector<1x32xf32>
    %65 = vector.broadcast %64 : vector<1x32xf32> to vector<8x32xf32>
    %66 = arith.addf %62, %65 : vector<8x32xf32>
    %67 = arith.addf %66, %3 : vector<8x32xf32>
    %c0_26 = arith.constant 0 : index
    %c0_27 = arith.constant 0 : index
    %c0_28 = arith.constant 0 : index
    %68 = vector.load %arg9[%c0_26, %c0_27, %c0_28] : memref<1x1x32xf32, #tpu.memory_space<vmem>>, vector<1x1x32xf32>
    %69 = vector.shape_cast %68 : vector<1x1x32xf32> to vector<1x32xf32>
    %c0_29 = arith.constant 0 : index
    %c0_30 = arith.constant 0 : index
    %c0_31 = arith.constant 0 : index
    %70 = vector.load %arg10[%c0_29, %c0_30, %c0_31] : memref<1x1x32xf32, #tpu.memory_space<vmem>>, vector<1x1x32xf32>
    %71 = vector.shape_cast %70 : vector<1x1x32xf32> to vector<1x32xf32>
    %cst_32 = arith.constant dense<0.000000e+00> : vector<8xf32>
    %72 = vector.multi_reduction <add>, %67, %cst_32 [1] : vector<8x32xf32> to vector<8xf32>
    %73 = vector.shape_cast %72 : vector<8xf32> to vector<8x1xf32>
    %cst_33 = arith.constant 3.200000e+01 : f32
    %74 = vector.broadcast %cst_33 : f32 to vector<8x1xf32>
    %75 = arith.divf %73, %74 : vector<8x1xf32>
    %76 = vector.broadcast %75 : vector<8x1xf32> to vector<8x32xf32>
    %77 = arith.subf %67, %76 : vector<8x32xf32>
    %78 = arith.mulf %77, %77 : vector<8x32xf32>
    %cst_34 = arith.constant dense<0.000000e+00> : vector<8xf32>
    %79 = vector.multi_reduction <add>, %78, %cst_34 [1] : vector<8x32xf32> to vector<8xf32>
    %80 = vector.shape_cast %79 : vector<8xf32> to vector<8x1xf32>
    %cst_35 = arith.constant 3.200000e+01 : f32
    %81 = vector.broadcast %cst_35 : f32 to vector<8x1xf32>
    %82 = arith.divf %80, %81 : vector<8x1xf32>
    %83 = vector.broadcast %75 : vector<8x1xf32> to vector<8x32xf32>
    %84 = arith.subf %67, %83 : vector<8x32xf32>
    %cst_36 = arith.constant 9.99999996E-13 : f32
    %85 = vector.broadcast %cst_36 : f32 to vector<8x1xf32>
    %86 = arith.addf %82, %85 : vector<8x1xf32>
    %87 = math.rsqrt %86 : vector<8x1xf32>
    %88 = vector.broadcast %87 : vector<8x1xf32> to vector<8x32xf32>
    %89 = arith.mulf %84, %88 : vector<8x32xf32>
    %90 = vector.broadcast %69 : vector<1x32xf32> to vector<8x32xf32>
    %91 = arith.mulf %89, %90 : vector<8x32xf32>
    %92 = vector.broadcast %71 : vector<1x32xf32> to vector<8x32xf32>
    %93 = arith.addf %91, %92 : vector<8x32xf32>
    %94 = arith.truncf %93 : vector<8x32xf32> to vector<8x32xbf16>
    %c0_37 = arith.constant 0 : index
    %c0_38 = arith.constant 0 : index
    %c0_39 = arith.constant 0 : index
    %95 = vector.load %arg11[%c0_37, %c0_38, %c0_39] : memref<1x32x64xbf16, #tpu.memory_space<vmem>>, vector<1x32x64xbf16>
    %96 = vector.shape_cast %95 : vector<1x32x64xbf16> to vector<32x64xbf16>
    %cst_40 = arith.constant dense<0.000000e+00> : vector<8x64xf32>
    %97 = tpu.matmul %94, %96, %cst_40 {dimension_numbers = #tpu.dot_dimension_numbers<[1], [0], [0], [1], [0, 0, 1, 1], [], []>} : vector<8x32xbf16>, vector<32x64xbf16>, vector<8x64xf32> -> vector<8x64xf32>
    %c0_41 = arith.constant 0 : index
    %c0_42 = arith.constant 0 : index
    %c0_43 = arith.constant 0 : index
    %98 = vector.load %arg12[%c0_41, %c0_42, %c0_43] : memref<1x1x64xf32, #tpu.memory_space<vmem>>, vector<1x1x64xf32>
    %99 = vector.shape_cast %98 : vector<1x1x64xf32> to vector<1x64xf32>
    %100 = vector.broadcast %99 : vector<1x64xf32> to vector<8x64xf32>
    %101 = arith.addf %97, %100 : vector<8x64xf32>
    %cst_44 = arith.constant 5.000000e-01 : f32
    %102 = vector.broadcast %cst_44 : f32 to vector<8x64xf32>
    %103 = arith.mulf %102, %101 : vector<8x64xf32>
    %cst_45 = arith.constant 4.471500e-02 : f32
    %104 = vector.broadcast %cst_45 : f32 to vector<8x64xf32>
    %105 = arith.mulf %104, %101 : vector<8x64xf32>
    %106 = arith.mulf %105, %101 : vector<8x64xf32>
    %107 = arith.mulf %106, %101 : vector<8x64xf32>
    %108 = arith.addf %101, %107 : vector<8x64xf32>
    %cst_46 = arith.constant 0.797884583 : f32
    %109 = vector.broadcast %cst_46 : f32 to vector<8x64xf32>
    %110 = arith.mulf %109, %108 : vector<8x64xf32>
    %111 = math.tanh %110 : vector<8x64xf32>
    %cst_47 = arith.constant 1.000000e+00 : f32
    %112 = vector.broadcast %cst_47 : f32 to vector<8x64xf32>
    %113 = arith.addf %112, %111 : vector<8x64xf32>
    %114 = arith.mulf %103, %113 : vector<8x64xf32>
    %115 = arith.truncf %114 : vector<8x64xf32> to vector<8x64xbf16>
    %c0_48 = arith.constant 0 : index
    %c0_49 = arith.constant 0 : index
    %c0_50 = arith.constant 0 : index
    %116 = vector.load %arg13[%c0_48, %c0_49, %c0_50] : memref<1x64x32xbf16, #tpu.memory_space<vmem>>, vector<1x64x32xbf16>
    %117 = vector.shape_cast %116 : vector<1x64x32xbf16> to vector<64x32xbf16>
    %cst_51 = arith.constant dense<0.000000e+00> : vector<8x32xf32>
    %118 = tpu.matmul %115, %117, %cst_51 {dimension_numbers = #tpu.dot_dimension_numbers<[1], [0], [0], [1], [0, 0, 1, 1], [], []>} : vector<8x64xbf16>, vector<64x32xbf16>, vector<8x32xf32> -> vector<8x32xf32>
    %c0_52 = arith.constant 0 : index
    %c0_53 = arith.constant 0 : index
    %c0_54 = arith.constant 0 : index
    %119 = vector.load %arg14[%c0_52, %c0_53, %c0_54] : memref<1x1x32xf32, #tpu.memory_space<vmem>>, vector<1x1x32xf32>
    %120 = vector.shape_cast %119 : vector<1x1x32xf32> to vector<1x32xf32>
    %121 = vector.broadcast %120 : vector<1x32xf32> to vector<8x32xf32>
    %122 = arith.addf %118, %121 : vector<8x32xf32>
    %123 = arith.addf %122, %93 : vector<8x32xf32>
    %c0_55 = arith.constant 0 : index
    %c0_56 = arith.constant 0 : index
    %c0_57 = arith.constant 0 : index
    %124 = vector.load %arg15[%c0_55, %c0_56, %c0_57] : memref<1x1x32xf32, #tpu.memory_space<vmem>>, vector<1x1x32xf32>
    %125 = vector.shape_cast %124 : vector<1x1x32xf32> to vector<1x32xf32>
    %c0_58 = arith.constant 0 : index
    %c0_59 = arith.constant 0 : index
    %c0_60 = arith.constant 0 : index
    %126 = vector.load %arg16[%c0_58, %c0_59, %c0_60] : memref<1x1x32xf32, #tpu.memory_space<vmem>>, vector<1x1x32xf32>
    %127 = vector.shape_cast %126 : vector<1x1x32xf32> to vector<1x32xf32>
    %cst_61 = arith.constant dense<0.000000e+00> : vector<8xf32>
    %128 = vector.multi_reduction <add>, %123, %cst_61 [1] : vector<8x32xf32> to vector<8xf32>
    %129 = vector.shape_cast %128 : vector<8xf32> to vector<8x1xf32>
    %cst_62 = arith.constant 3.200000e+01 : f32
    %130 = vector.broadcast %cst_62 : f32 to vector<8x1xf32>
    %131 = arith.divf %129, %130 : vector<8x1xf32>
    %132 = vector.broadcast %131 : vector<8x1xf32> to vector<8x32xf32>
    %133 = arith.subf %123, %132 : vector<8x32xf32>
    %134 = arith.mulf %133, %133 : vector<8x32xf32>
    %cst_63 = arith.constant dense<0.000000e+00> : vector<8xf32>
    %135 = vector.multi_reduction <add>, %134, %cst_63 [1] : vector<8x32xf32> to vector<8xf32>
    %136 = vector.shape_cast %135 : vector<8xf32> to vector<8x1xf32>
    %cst_64 = arith.constant 3.200000e+01 : f32
    %137 = vector.broadcast %cst_64 : f32 to vector<8x1xf32>
    %138 = arith.divf %136, %137 : vector<8x1xf32>
    %139 = vector.broadcast %131 : vector<8x1xf32> to vector<8x32xf32>
    %140 = arith.subf %123, %139 : vector<8x32xf32>
    %cst_65 = arith.constant 9.99999996E-13 : f32
    %141 = vector.broadcast %cst_65 : f32 to vector<8x1xf32>
    %142 = arith.addf %138, %141 : vector<8x1xf32>
    %143 = math.rsqrt %142 : vector<8x1xf32>
    %144 = vector.broadcast %143 : vector<8x1xf32> to vector<8x32xf32>
    %145 = arith.mulf %140, %144 : vector<8x32xf32>
    %146 = vector.broadcast %125 : vector<1x32xf32> to vector<8x32xf32>
    %147 = arith.mulf %145, %146 : vector<8x32xf32>
    %148 = vector.broadcast %127 : vector<1x32xf32> to vector<8x32xf32>
    %149 = arith.addf %147, %148 : vector<8x32xf32>
    %c0_66 = arith.constant 0 : index
    %c0_67 = arith.constant 0 : index
    %150 = vector.load %arg18[%c0_66, %c0_67] : memref<8x32xf32, #tpu.memory_space<vmem>>, vector<8x32xf32>
    tpu.vector_store %arg18[%c0_66, %c0_67], %149 {strides = array<i32>} : memref<8x32xf32, #tpu.memory_space<vmem>>, vector<8x32xf32>,
    %c1_i32 = arith.constant 1 : i32
    %151 = arith.cmpi eq, %arg1, %c1_i32 : i32
    %152 = arith.extui %151 : i1 to i32
    %c0_i32_68 = arith.constant 0 : i32
    %153 = arith.cmpi ne, %152, %c0_i32_68 : i32
    scf.if %153 {
      %cst_69 = arith.constant dense<0.000000e+00> : vector<32xf32>
      %154 = vector.multi_reduction <add>, %149, %cst_69 [0] : vector<8x32xf32> to vector<32xf32>
      %155 = vector.shape_cast %154 : vector<32xf32> to vector<1x32xf32>
      %cst_70 = arith.constant 8.000000e+00 : f32
      %156 = vector.broadcast %cst_70 : f32 to vector<1x32xf32>
      %157 = arith.divf %155, %156 : vector<1x32xf32>
      %c0_71 = arith.constant 0 : index
      %c0_72 = arith.constant 0 : index
      %c0_73 = arith.constant 0 : index
      %158 = vector.load %arg17[%c0_71, %c0_72, %c0_73] : memref<1x1x32xf32, #tpu.memory_space<vmem>>, vector<1x1x32xf32>
      %159 = vector.shape_cast %158 : vector<1x1x32xf32> to vector<1x32xf32>
      %160 = vector.shape_cast %157 : vector<1x32xf32> to vector<1x1x32xf32>
      tpu.vector_store %arg17[%c0_71, %c0_72, %c0_73], %160 {strides = array<i32>} : memref<1x1x32xf32, #tpu.memory_space<vmem>>, vector<1x1x32xf32>,
    } else {
    }
    return
  }
  func.func @transform_0(%arg0: i32, %arg1: i32) -> (i32, i32, i32) {
    %c0_i32 = arith.constant 0 : i32
    %c0_i32_0 = arith.constant 0 : i32
    %c0_i32_1 = arith.constant 0 : i32
    return %arg0, %c0_i32, %c0_i32_0 : i32, i32, i32
  }
  func.func @transform_1(%arg0: i32, %arg1: i32) -> (i32, i32) {
    %c0_i32 = arith.constant 0 : i32
    %c0_i32_0 = arith.constant 0 : i32
    %c0_i32_1 = arith.constant 0 : i32
    return %c0_i32, %c0_i32_0 : i32, i32
  }
  func.func @transform_2(%arg0: i32, %arg1: i32) -> (i32, i32) {
    %c0_i32 = arith.constant 0 : i32
    %c0_i32_0 = arith.constant 0 : i32
    %c0_i32_1 = arith.constant 0 : i32
    return %c0_i32, %c0_i32_0 : i32, i32
  }
  func.func @transform_3(%arg0: i32, %arg1: i32) -> (i32, i32, i32) {
    %c0_i32 = arith.constant 0 : i32
    %c0_i32_0 = arith.constant 0 : i32
    %c0_i32_1 = arith.constant 0 : i32
    return %arg1, %c0_i32, %c0_i32_0 : i32, i32, i32
  }
  func.func @transform_4(%arg0: i32, %arg1: i32) -> (i32, i32, i32) {
    %c0_i32 = arith.constant 0 : i32
    %c0_i32_0 = arith.constant 0 : i32
    %c0_i32_1 = arith.constant 0 : i32
    return %arg1, %c0_i32, %c0_i32_0 : i32, i32, i32
  }
  func.func @transform_5(%arg0: i32, %arg1: i32) -> (i32, i32, i32) {
    %c0_i32 = arith.constant 0 : i32
    %c0_i32_0 = arith.constant 0 : i32
    %c0_i32_1 = arith.constant 0 : i32
    return %arg1, %c0_i32, %c0_i32_0 : i32, i32, i32
  }
  func.func @transform_6(%arg0: i32, %arg1: i32) -> (i32, i32, i32) {
    %c0_i32 = arith.constant 0 : i32
    %c0_i32_0 = arith.constant 0 : i32
    %c0_i32_1 = arith.constant 0 : i32
    return %arg1, %c0_i32, %c0_i32_0 : i32, i32, i32
  }
  func.func @transform_7(%arg0: i32, %arg1: i32) -> (i32, i32, i32) {
    %c0_i32 = arith.constant 0 : i32
    %c0_i32_0 = arith.constant 0 : i32
    %c0_i32_1 = arith.constant 0 : i32
    return %arg1, %c0_i32, %c0_i32_0 : i32, i32, i32
  }
  func.func @transform_8(%arg0: i32, %arg1: i32) -> (i32, i32, i32) {
    %c0_i32 = arith.constant 0 : i32
    %c0_i32_0 = arith.constant 0 : i32
    %c0_i32_1 = arith.constant 0 : i32
    return %arg1, %c0_i32, %c0_i32_0 : i32, i32, i32
  }
  func.func @transform_9(%arg0: i32, %arg1: i32) -> (i32, i32, i32) {
    %c0_i32 = arith.constant 0 : i32
    %c0_i32_0 = arith.constant 0 : i32
    %c0_i32_1 = arith.constant 0 : i32
    return %arg1, %c0_i32, %c0_i32_0 : i32, i32, i32
  }
  func.func @transform_10(%arg0: i32, %arg1: i32) -> (i32, i32, i32) {
    %c0_i32 = arith.constant 0 : i32
    %c0_i32_0 = arith.constant 0 : i32
    %c0_i32_1 = arith.constant 0 : i32
    return %arg1, %c0_i32, %c0_i32_0 : i32, i32, i32
  }
  func.func @transform_11(%arg0: i32, %arg1: i32) -> (i32, i32, i32) {
    %c0_i32 = arith.constant 0 : i32
    %c0_i32_0 = arith.constant 0 : i32
    %c0_i32_1 = arith.constant 0 : i32
    return %arg1, %c0_i32, %c0_i32_0 : i32, i32, i32
  }
  func.func @transform_12(%arg0: i32, %arg1: i32) -> (i32, i32, i32) {
    %c0_i32 = arith.constant 0 : i32
    %c0_i32_0 = arith.constant 0 : i32
    %c0_i32_1 = arith.constant 0 : i32
    return %arg1, %c0_i32, %c0_i32_0 : i32, i32, i32
  }
  func.func @transform_13(%arg0: i32, %arg1: i32) -> (i32, i32, i32) {
    %c0_i32 = arith.constant 0 : i32
    %c0_i32_0 = arith.constant 0 : i32
    %c0_i32_1 = arith.constant 0 : i32
    return %arg1, %c0_i32, %c0_i32_0 : i32, i32, i32
  }
  func.func @transform_14(%arg0: i32, %arg1: i32) -> (i32, i32, i32) {
    %c0_i32 = arith.constant 0 : i32
    %c0_i32_0 = arith.constant 0 : i32
    %c0_i32_1 = arith.constant 0 : i32
    return %arg1, %c0_i32, %c0_i32_0 : i32, i32, i32
  }
  func.func @transform_15(%arg0: i32, %arg1: i32) -> (i32, i32, i32) {
    %c0_i32 = arith.constant 0 : i32
    %c0_i32_0 = arith.constant 0 : i32
    %c0_i32_1 = arith.constant 0 : i32
    return %arg0, %c0_i32, %c0_i32_0 : i32, i32, i32
  }
}

</mosaic_0001>

<llo_original>
// kernel: section_model_forward.1
$region0: #{section_model_forward.1}
  #allocation0 [shape = 'u32[]', space=smem, size = 0x4, offset = 0x4, fixed_abs, tag = 'smem constant byte address 0x4 - core index']
  #allocation1 [shape = 'u32[144,128]{1,0:T(1,128)}', space=vmem, size = 0x12000, scoped, tag = 'internal scratch']
  #allocation2 [shape = 'f32[8,32]{1,0:T(8,128)}', space=vmem, size = 0x1000, scoped, tag = 'scratch operand']
  %s0 = inlined_call_operand.vmem [shape: f32[2,8,32], index: 0, kind: input, shape index: {}]
  %s1 = inlined_call_operand.vmem [shape: f32[1,32], index: 1, kind: input, shape index: {}]
  %s2 = inlined_call_operand.vmem [shape: f32[1,32], index: 2, kind: input, shape index: {}]
  %s3 = inlined_call_operand.vmem [shape: bf16[2,32,96], index: 3, kind: input, shape index: {}]
  %s4 = inlined_call_operand.vmem [shape: f32[2,1,96], index: 4, kind: input, shape index: {}]
  %s5 = inlined_call_operand.vmem [shape: bf16[2,32,32], index: 5, kind: input, shape index: {}]
  %s6 = inlined_call_operand.vmem [shape: f32[2,1,32], index: 6, kind: input, shape index: {}]
  %s7 = inlined_call_operand.vmem [shape: f32[2,1,32], index: 7, kind: input, shape index: {}]
  %s8 = inlined_call_operand.vmem [shape: f32[2,1,32], index: 8, kind: input, shape index: {}]
  %s9 = inlined_call_operand.vmem [shape: bf16[2,32,64], index: 9, kind: input, shape index: {}]
  %s10 = inlined_call_operand.vmem [shape: f32[2,1,64], index: 10, kind: input, shape index: {}]
  %s11 = inlined_call_operand.vmem [shape: bf16[2,64,32], index: 11, kind: input, shape index: {}]
  %s12 = inlined_call_operand.vmem [shape: f32[2,1,32], index: 12, kind: input, shape index: {}]
  %s13 = inlined_call_operand.vmem [shape: f32[2,1,32], index: 13, kind: input, shape index: {}]
  %s14 = inlined_call_operand.vmem [shape: f32[2,1,32], index: 14, kind: input, shape index: {}]
  %s15 = inlined_call_operand.hbm [shape: f32[2,1,32], index: 15, kind: output, shape index: {}]
  %s16 = sld [smem:[#allocation0]]
  $region101: #{section_model_forward.1} parent=0
    _
  %s18 = ssub.s32 1, %s16
  %s19 = scalar_select 0, %s18, %s16
  $region1: #{section_model_forward.1} parent=0
    #allocation3 [shape = 'u8[1024]{0}', space=vmem, size = 0x400, scoped, tag = 'output window, operand 0']
    #allocation4 [shape = 's32[2]{0}', space=sflag, size = 0x8, scoped, tag = 'scoped memory for section_model_forward.1']
    %20 = vsyncpa [#allocation4], 0
    %s21 = scalar_lea.sflag [#allocation4], 1
    %22 = vsyncpa %s21, 0
    loop: start=0, step=1, limit=6
    $region2: #{section_model_forward.1} parent=1 // loop_pre_header
      _
    $region3: #{section_model_forward.1} parent=1 // loop_header
      %s24 = sphi 0, %s28
      %p25 = scmp.ge.s32.totalorder %s24, 6
      %s31 = sphi 0, %s43
      %s32 = sphi 0, %s39
      %s33 = sphi 0, %s31
      %s34 = sphi 0, %s32
      %s35 = sphi 0, %s33
      %s36 = sphi 0, %s34
      %s46 = sphi 0, %s48
      %s49 = sphi 0, %s46
      %s50 = sphi 0, %s49
      %s66 = sphi 0, %s50
      %s70 = sphi 0, %s70
      %s72 = sphi 0, %s70
      %s73 = sphi 0, %s72
      %s87 = sphi 0, %s73
      %s91 = sphi 0, %s91
      %s93 = sphi 0, %s91
      %s94 = sphi 0, %s93
      %s108 = sphi 0, %s94
      %s114 = sphi 0, %s116
      %s117 = sphi 0, %s114
      %s118 = sphi 0, %s117
      %s134 = sphi 0, %s118
      %s140 = sphi 0, %s142
      %s143 = sphi 0, %s140
      %s144 = sphi 0, %s143
      %s160 = sphi 0, %s144
      %s166 = sphi 0, %s168
      %s169 = sphi 0, %s166
      %s170 = sphi 0, %s169
      %s186 = sphi 0, %s170
      %s192 = sphi 0, %s194
      %s195 = sphi 0, %s192
      %s196 = sphi 0, %s195
      %s212 = sphi 0, %s196
      %s218 = sphi 0, %s220
      %s221 = sphi 0, %s218
      %s222 = sphi 0, %s221
      %s238 = sphi 0, %s222
      %s244 = sphi 0, %s246
      %s247 = sphi 0, %s244
      %s248 = sphi 0, %s247
      %s264 = sphi 0, %s248
      %s270 = sphi 0, %s272
      %s273 = sphi 0, %s270
      %s274 = sphi 0, %s273
      %s290 = sphi 0, %s274
      %s296 = sphi 0, %s298
      %s299 = sphi 0, %s296
      %s300 = sphi 0, %s299
      %s316 = sphi 0, %s300
      %s322 = sphi 0, %s324
      %s325 = sphi 0, %s322
      %s326 = sphi 0, %s325
      %s342 = sphi 0, %s326
      %s348 = sphi 0, %s350
      %s351 = sphi 0, %s348
      %s352 = sphi 0, %s351
      %s368 = sphi 0, %s352
      %s374 = sphi 0, %s376
      %s377 = sphi 0, %s374
      %s378 = sphi 0, %s377
      %s394 = sphi 0, %s378
      %s400 = sphi 0, %s402
      %s403 = sphi 0, %s400
      %s404 = sphi 0, %s403
      %s420 = sphi 0, %s404
      %s426 = sphi 0, %s428
      %s429 = sphi 0, %s426
      %s430 = sphi 0, %s429
      %s446 = sphi 0, %s430
    $region4: #{section_model_forward.1} parent=1 // loop_header_branch
      %27 = sbr.rel (%p25) target = $region8
    $region5: #{section_model_forward.1} parent=1 // loop_body
      %s29 = ssub.s32 %s24, 1
      %s30 = ssub.s32 %s24, 2
      %s37 = sadd.s32 1, %s32
      %p38 = scmp.ge.s32.totalorder %s37, 2
      %s39 = scalar_select %p38, 0, %s37
      %s40 = sadd.s32 1, %s31
      %s41 = scalar_select %p38, %s40, %s31
      %p42 = scmp.ge.s32.totalorder %s41, 2
      %s43 = scalar_select %p42, 0, %s41
      %s44 = ssub.s32 %s31, %s43
      %p45 = scmp.eq.s32.totalorder %s44, 0
      %s47 = sadd.s32 %s46, 1
      %s48 = scalar_select %p45, %s46, %s47
      %p51 = pneg %p45
      %p52 = scmp.eq.s32.totalorder %s24, 3
      %p53 = por %p51, %p52
      %p54 = scmp.ne.s32.totalorder %s46, %s49
      %p55 = scmp.eq.s32.totalorder %s24, 0
      %p56 = por %p54, %p55
      %p57 = scmp.ne.s32.totalorder %s46, %s49
      %p58 = scmp.eq.s32.totalorder %s29, 3
      %p59 = por %p57, %p58
      %p60 = scmp.ne.s32.totalorder %s49, %s50
      %p61 = scmp.eq.s32.totalorder %s29, 0
      %p62 = por %p60, %p61
      %p63 = scmp.ne.s32.totalorder %s49, %s50
      %p64 = scmp.eq.s32.totalorder %s30, 3
      %p65 = por %p63, %p64
      %p67 = scmp.ne.s32.totalorder %s50, %s66
      %p68 = scmp.eq.s32.totalorder %s30, 0
      %p69 = por %p67, %p68
      %s71 = sadd.s32 %s70, 1
      %p74 = scmp.eq.s32.totalorder %s24, 3
      %p75 = scmp.ne.s32.totalorder %s70, %s72
      %p76 = scmp.eq.s32.totalorder %s24, 0
      %p77 = por %p75, %p76
      %p78 = scmp.ne.s32.totalorder %s70, %s72
      %p79 = scmp.eq.s32.totalorder %s29, 3
      %p80 = por %p78, %p79
      %p81 = scmp.ne.s32.totalorder %s72, %s73
      %p82 = scmp.eq.s32.totalorder %s29, 0
      %p83 = por %p81, %p82
      %p84 = scmp.ne.s32.totalorder %s72, %s73
      %p85 = scmp.eq.s32.totalorder %s30, 3
      %p86 = por %p84, %p85
      %p88 = scmp.ne.s32.totalorder %s73, %s87
      %p89 = scmp.eq.s32.totalorder %s30, 0
      %p90 = por %p88, %p89
      %s92 = sadd.s32 %s91, 1
      %p95 = scmp.eq.s32.totalorder %s24, 3
      %p96 = scmp.ne.s32.totalorder %s91, %s93
      %p97 = scmp.eq.s32.totalorder %s24, 0
      %p98 = por %p96, %p97
      %p99 = scmp.ne.s32.totalorder %s91, %s93
      %p100 = scmp.eq.s32.totalorder %s29, 3
      %p101 = por %p99, %p100
      %p102 = scmp.ne.s32.totalorder %s93, %s94
      %p103 = scmp.eq.s32.totalorder %s29, 0
      %p104 = por %p102, %p103
      %p105 = scmp.ne.s32.totalorder %s93, %s94
      %p106 = scmp.eq.s32.totalorder %s30, 3
      %p107 = por %p105, %p106
      %p109 = scmp.ne.s32.totalorder %s94, %s108
      %p110 = scmp.eq.s32.totalorder %s30, 0
      %p111 = por %p109, %p110
      %s112 = ssub.s32 %s32, %s39
      %p113 = scmp.eq.s32.totalorder %s112, 0
      %s115 = sadd.s32 %s114, 1
      %s116 = scalar_select %p113, %s114, %s115
      %p119 = pneg %p113
      %p120 = scmp.eq.s32.totalorder %s24, 3
      %p121 = por %p119, %p120
      %p122 = scmp.ne.s32.totalorder %s114, %s117
      %p123 = scmp.eq.s32.totalorder %s24, 0
      %p124 = por %p122, %p123
      %p125 = scmp.ne.s32.totalorder %s114, %s117
      %p126 = scmp.eq.s32.totalorder %s29, 3
      %p127 = por %p125, %p126
      %p128 = scmp.ne.s32.totalorder %s117, %s118
      %p129 = scmp.eq.s32.totalorder %s29, 0
      %p130 = por %p128, %p129
      %p131 = scmp.ne.s32.totalorder %s117, %s118
      %p132 = scmp.eq.s32.totalorder %s30, 3
      %p133 = por %p131, %p132
      %p135 = scmp.ne.s32.totalorder %s118, %s134
      %p136 = scmp.eq.s32.totalorder %s30, 0
      %p137 = por %p135, %p136
      %s138 = ssub.s32 %s32, %s39
      %p139 = scmp.eq.s32.totalorder %s138, 0
      %s141 = sadd.s32 %s140, 1
      %s142 = scalar_select %p139, %s140, %s141
      %p145 = pneg %p139
      %p146 = scmp.eq.s32.totalorder %s24, 3
      %p147 = por %p145, %p146
      %p148 = scmp.ne.s32.totalorder %s140, %s143
      %p149 = scmp.eq.s32.totalorder %s24, 0
      %p150 = por %p148, %p149
      %p151 = scmp.ne.s32.totalorder %s140, %s143
      %p152 = scmp.eq.s32.totalorder %s29, 3
      %p153 = por %p151, %p152
      %p154 = scmp.ne.s32.totalorder %s143, %s144
      %p155 = scmp.eq.s32.totalorder %s29, 0
      %p156 = por %p154, %p155
      %p157 = scmp.ne.s32.totalorder %s143, %s144
      %p158 = scmp.eq.s32.totalorder %s30, 3
      %p159 = por %p157, %p158
      %p161 = scmp.ne.s32.totalorder %s144, %s160
      %p162 = scmp.eq.s32.totalorder %s30, 0
      %p163 = por %p161, %p162
      %s164 = ssub.s32 %s32, %s39
      %p165 = scmp.eq.s32.totalorder %s164, 0
      %s167 = sadd.s32 %s166, 1
      %s168 = scalar_select %p165, %s166, %s167
      %p171 = pneg %p165
      %p172 = scmp.eq.s32.totalorder %s24, 3
      %p173 = por %p171, %p172
      %p174 = scmp.ne.s32.totalorder %s166, %s169
      %p175 = scmp.eq.s32.totalorder %s24, 0
      %p176 = por %p174, %p175
      %p177 = scmp.ne.s32.totalorder %s166, %s169
      %p178 = scmp.eq.s32.totalorder %s29, 3
      %p179 = por %p177, %p178
      %p180 = scmp.ne.s32.totalorder %s169, %s170
      %p181 = scmp.eq.s32.totalorder %s29, 0
      %p182 = por %p180, %p181
      %p183 = scmp.ne.s32.totalorder %s169, %s170
      %p184 = scmp.eq.s32.totalorder %s30, 3
      %p185 = por %p183, %p184
      %p187 = scmp.ne.s32.totalorder %s170, %s186
      %p188 = scmp.eq.s32.totalorder %s30, 0
      %p189 = por %p187, %p188
      %s190 = ssub.s32 %s32, %s39
      %p191 = scmp.eq.s32.totalorder %s190, 0
      %s193 = sadd.s32 %s192, 1
      %s194 = scalar_select %p191, %s192, %s193
      %p197 = pneg %p191
      %p198 = scmp.eq.s32.totalorder %s24, 3
      %p199 = por %p197, %p198
      %p200 = scmp.ne.s32.totalorder %s192, %s195
      %p201 = scmp.eq.s32.totalorder %s24, 0
      %p202 = por %p200, %p201
      %p203 = scmp.ne.s32.totalorder %s192, %s195
      %p204 = scmp.eq.s32.totalorder %s29, 3
      %p205 = por %p203, %p204
      %p206 = scmp.ne.s32.totalorder %s195, %s196
      %p207 = scmp.eq.s32.totalorder %s29, 0
      %p208 = por %p206, %p207
      %p209 = scmp.ne.s32.totalorder %s195, %s196
      %p210 = scmp.eq.s32.totalorder %s30, 3
      %p211 = por %p209, %p210
      %p213 = scmp.ne.s32.totalorder %s196, %s212
      %p214 = scmp.eq.s32.totalorder %s30, 0
      %p215 = por %p213, %p214
      %s216 = ssub.s32 %s32, %s39
      %p217 = scmp.eq.s32.totalorder %s216, 0
      %s219 = sadd.s32 %s218, 1
      %s220 = scalar_select %p217, %s218, %s219
      %p223 = pneg %p217
      %p224 = scmp.eq.s32.totalorder %s24, 3
      %p225 = por %p223, %p224
      %p226 = scmp.ne.s32.totalorder %s218, %s221
      %p227 = scmp.eq.s32.totalorder %s24, 0
      %p228 = por %p226, %p227
      %p229 = scmp.ne.s32.totalorder %s218, %s221
      %p230 = scmp.eq.s32.totalorder %s29, 3
      %p231 = por %p229, %p230
      %p232 = scmp.ne.s32.totalorder %s221, %s222
      %p233 = scmp.eq.s32.totalorder %s29, 0
      %p234 = por %p232, %p233
      %p235 = scmp.ne.s32.totalorder %s221, %s222
      %p236 = scmp.eq.s32.totalorder %s30, 3
      %p237 = por %p235, %p236
      %p239 = scmp.ne.s32.totalorder %s222, %s238
      %p240 = scmp.eq.s32.totalorder %s30, 0
      %p241 = por %p239, %p240
      %s242 = ssub.s32 %s32, %s39
      %p243 = scmp.eq.s32.totalorder %s242, 0
      %s245 = sadd.s32 %s244, 1
      %s246 = scalar_select %p243, %s244, %s245
      %p249 = pneg %p243
      %p250 = scmp.eq.s32.totalorder %s24, 3
      %p251 = por %p249, %p250
      %p252 = scmp.ne.s32.totalorder %s244, %s247
      %p253 = scmp.eq.s32.totalorder %s24, 0
      %p254 = por %p252, %p253
      %p255 = scmp.ne.s32.totalorder %s244, %s247
      %p256 = scmp.eq.s32.totalorder %s29, 3
      %p257 = por %p255, %p256
      %p258 = scmp.ne.s32.totalorder %s247, %s248
      %p259 = scmp.eq.s32.totalorder %s29, 0
      %p260 = por %p258, %p259
      %p261 = scmp.ne.s32.totalorder %s247, %s248
      %p262 = scmp.eq.s32.totalorder %s30, 3
      %p263 = por %p261, %p262
      %p265 = scmp.ne.s32.totalorder %s248, %s264
      %p266 = scmp.eq.s32.totalorder %s30, 0
      %p267 = por %p265, %p266
      %s268 = ssub.s32 %s32, %s39
      %p269 = scmp.eq.s32.totalorder %s268, 0
      %s271 = sadd.s32 %s270, 1
      %s272 = scalar_select %p269, %s270, %s271
      %p275 = pneg %p269
      %p276 = scmp.eq.s32.totalorder %s24, 3
      %p277 = por %p275, %p276
      %p278 = scmp.ne.s32.totalorder %s270, %s273
      %p279 = scmp.eq.s32.totalorder %s24, 0
      %p280 = por %p278, %p279
      %p281 = scmp.ne.s32.totalorder %s270, %s273
      %p282 = scmp.eq.s32.totalorder %s29, 3
      %p283 = por %p281, %p282
      %p284 = scmp.ne.s32.totalorder %s273, %s274
      %p285 = scmp.eq.s32.totalorder %s29, 0
      %p286 = por %p284, %p285
      %p287 = scmp.ne.s32.totalorder %s273, %s274
      %p288 = scmp.eq.s32.totalorder %s30, 3
      %p289 = por %p287, %p288
      %p291 = scmp.ne.s32.totalorder %s274, %s290
      %p292 = scmp.eq.s32.totalorder %s30, 0
      %p293 = por %p291, %p292
      %s294 = ssub.s32 %s32, %s39
      %p295 = scmp.eq.s32.totalorder %s294, 0
      %s297 = sadd.s32 %s296, 1
      %s298 = scalar_select %p295, %s296, %s297
      %p301 = pneg %p295
      %p302 = scmp.eq.s32.totalorder %s24, 3
      %p303 = por %p301, %p302
      %p304 = scmp.ne.s32.totalorder %s296, %s299
      %p305 = scmp.eq.s32.totalorder %s24, 0
      %p306 = por %p304, %p305
      %p307 = scmp.ne.s32.totalorder %s296, %s299
      %p308 = scmp.eq.s32.totalorder %s29, 3
      %p309 = por %p307, %p308
      %p310 = scmp.ne.s32.totalorder %s299, %s300
      %p311 = scmp.eq.s32.totalorder %s29, 0
      %p312 = por %p310, %p311
      %p313 = scmp.ne.s32.totalorder %s299, %s300
      %p314 = scmp.eq.s32.totalorder %s30, 3
      %p315 = por %p313, %p314
      %p317 = scmp.ne.s32.totalorder %s300, %s316
      %p318 = scmp.eq.s32.totalorder %s30, 0
      %p319 = por %p317, %p318
      %s320 = ssub.s32 %s32, %s39
      %p321 = scmp.eq.s32.totalorder %s320, 0
      %s323 = sadd.s32 %s322, 1
      %s324 = scalar_select %p321, %s322, %s323
      %p327 = pneg %p321
      %p328 = scmp.eq.s32.totalorder %s24, 3
      %p329 = por %p327, %p328
      %p330 = scmp.ne.s32.totalorder %s322, %s325
      %p331 = scmp.eq.s32.totalorder %s24, 0
      %p332 = por %p330, %p331
      %p333 = scmp.ne.s32.totalorder %s322, %s325
      %p334 = scmp.eq.s32.totalorder %s29, 3
      %p335 = por %p333, %p334
      %p336 = scmp.ne.s32.totalorder %s325, %s326
      %p337 = scmp.eq.s32.totalorder %s29, 0
      %p338 = por %p336, %p337
      %p339 = scmp.ne.s32.totalorder %s325, %s326
      %p340 = scmp.eq.s32.totalorder %s30, 3
      %p341 = por %p339, %p340
      %p343 = scmp.ne.s32.totalorder %s326, %s342
      %p344 = scmp.eq.s32.totalorder %s30, 0
      %p345 = por %p343, %p344
      %s346 = ssub.s32 %s32, %s39
      %p347 = scmp.eq.s32.totalorder %s346, 0
      %s349 = sadd.s32 %s348, 1
      %s350 = scalar_select %p347, %s348, %s349
      %p353 = pneg %p347
      %p354 = scmp.eq.s32.totalorder %s24, 3
      %p355 = por %p353, %p354
      %p356 = scmp.ne.s32.totalorder %s348, %s351
      %p357 = scmp.eq.s32.totalorder %s24, 0
      %p358 = por %p356, %p357
      %p359 = scmp.ne.s32.totalorder %s348, %s351
      %p360 = scmp.eq.s32.totalorder %s29, 3
      %p361 = por %p359, %p360
      %p362 = scmp.ne.s32.totalorder %s351, %s352
      %p363 = scmp.eq.s32.totalorder %s29, 0
      %p364 = por %p362, %p363
      %p365 = scmp.ne.s32.totalorder %s351, %s352
      %p366 = scmp.eq.s32.totalorder %s30, 3
      %p367 = por %p365, %p366
      %p369 = scmp.ne.s32.totalorder %s352, %s368
      %p370 = scmp.eq.s32.totalorder %s30, 0
      %p371 = por %p369, %p370
      %s372 = ssub.s32 %s32, %s39
      %p373 = scmp.eq.s32.totalorder %s372, 0
      %s375 = sadd.s32 %s374, 1
      %s376 = scalar_select %p373, %s374, %s375
      %p379 = pneg %p373
      %p380 = scmp.eq.s32.totalorder %s24, 3
      %p381 = por %p379, %p380
      %p382 = scmp.ne.s32.totalorder %s374, %s377
      %p383 = scmp.eq.s32.totalorder %s24, 0
      %p384 = por %p382, %p383
      %p385 = scmp.ne.s32.totalorder %s374, %s377
      %p386 = scmp.eq.s32.totalorder %s29, 3
      %p387 = por %p385, %p386
      %p388 = scmp.ne.s32.totalorder %s377, %s378
      %p389 = scmp.eq.s32.totalorder %s29, 0
      %p390 = por %p388, %p389
      %p391 = scmp.ne.s32.totalorder %s377, %s378
      %p392 = scmp.eq.s32.totalorder %s30, 3
      %p393 = por %p391, %p392
      %p395 = scmp.ne.s32.totalorder %s378, %s394
      %p396 = scmp.eq.s32.totalorder %s30, 0
      %p397 = por %p395, %p396
      %s398 = ssub.s32 %s32, %s39
      %p399 = scmp.eq.s32.totalorder %s398, 0
      %s401 = sadd.s32 %s400, 1
      %s402 = scalar_select %p399, %s400, %s401
      %p405 = pneg %p399
      %p406 = scmp.eq.s32.totalorder %s24, 3
      %p407 = por %p405, %p406
      %p408 = scmp.ne.s32.totalorder %s400, %s403
      %p409 = scmp.eq.s32.totalorder %s24, 0
      %p410 = por %p408, %p409
      %p411 = scmp.ne.s32.totalorder %s400, %s403
      %p412 = scmp.eq.s32.totalorder %s29, 3
      %p413 = por %p411, %p412
      %p414 = scmp.ne.s32.totalorder %s403, %s404
      %p415 = scmp.eq.s32.totalorder %s29, 0
      %p416 = por %p414, %p415
      %p417 = scmp.ne.s32.totalorder %s403, %s404
      %p418 = scmp.eq.s32.totalorder %s30, 3
      %p419 = por %p417, %p418
      %p421 = scmp.ne.s32.totalorder %s404, %s420
      %p422 = scmp.eq.s32.totalorder %s30, 0
      %p423 = por %p421, %p422
      %s424 = ssub.s32 %s31, %s43
      %p425 = scmp.eq.s32.totalorder %s424, 0
      %s427 = sadd.s32 %s426, 1
      %s428 = scalar_select %p425, %s426, %s427
      %p431 = pneg %p425
      %p432 = scmp.eq.s32.totalorder %s24, 3
      %p433 = por %p431, %p432
      %p434 = scmp.ne.s32.totalorder %s426, %s429
      %p435 = scmp.eq.s32.totalorder %s24, 0
      %p436 = por %p434, %p435
      %p437 = scmp.ne.s32.totalorder %s426, %s429
      %p438 = scmp.eq.s32.totalorder %s29, 3
      %p439 = por %p437, %p438
      %p440 = scmp.ne.s32.totalorder %s429, %s430
      %p441 = scmp.eq.s32.totalorder %s29, 0
      %p442 = por %p440, %p441
      %p443 = scmp.ne.s32.totalorder %s429, %s430
      %p444 = scmp.eq.s32.totalorder %s30, 3
      %p445 = por %p443, %p444
      %p447 = scmp.ne.s32.totalorder %s430, %s446
      %p448 = scmp.eq.s32.totalorder %s30, 0
      %p449 = por %p447, %p448
      %p450 = scmp.le.s32.totalorder 1, %s24
      %p451 = scmp.lt.s32.totalorder %s24, 5
      %p452 = pnand %p450, %p451
      %p453 = pneg %p452
      // Predicated region
      $region9: #{section_model_forward.1} parent=5 // pred_check
        _
      $region10: #{section_model_forward.1} parent=5 // pred_check_branch
        %455 = sbr.rel (%p452) target = $region12
      $region11: #{section_model_forward.1} parent=5 // pred_region
        %s456 = ssub.s32 %s24, 1
        // Predicated region
        $region13: #{section_model_forward.1} parent=11 // pred_check
          %p457 = pneg %p83
        $region14: #{section_model_forward.1} parent=11 // pred_check_branch
          %459 = sbr.rel (%p457) target = $region16
        $region15: #{section_model_forward.1} parent=11 // pred_region
          _
        $region16: #{section_model_forward.1} parent=11 // pred_fallthru
          _
        // Predicated region
        $region17: #{section_model_forward.1} parent=11 // pred_check
          %p460 = pneg %p104
        $region18: #{section_model_forward.1} parent=11 // pred_check_branch
          %462 = sbr.rel (%p460) target = $region20
        $region19: #{section_model_forward.1} parent=11 // pred_region
          _
        $region20: #{section_model_forward.1} parent=11 // pred_fallthru
          _
      $region12: #{section_model_forward.1} parent=5 // pred_fallthru
        _
      %p463 = scmp.lt.s32.totalorder %s24, 4
      // Predicated region
      $region21: #{section_model_forward.1} parent=5 // pred_check
        %p464 = pneg %p463
      $region22: #{section_model_forward.1} parent=5 // pred_check_branch
        %466 = sbr.rel (%p464) target = $region24
      $region23: #{section_model_forward.1} parent=5 // pred_region
        // Predicated region
        $region25: #{section_model_forward.1} parent=23 // pred_check
          %p467 = pneg %p56
        $region26: #{section_model_forward.1} parent=23 // pred_check_branch
          %469 = sbr.rel (%p467) target = $region28
        $region27: #{section_model_forward.1} parent=23 // pred_region
          %p470 = scmp.lt.s32.totalorder %s31, 1
          %s471 = scalar_select %p470, %s31, 1
          %s472 = smul.addr %s471, 8
          %s473 = scalar_lea.vmem %s0, %s472
        $region28: #{section_model_forward.1} parent=23 // pred_fallthru
          _
        // Predicated region
        $region29: #{section_model_forward.1} parent=23 // pred_check
          %p474 = pneg %p124
        $region30: #{section_model_forward.1} parent=23 // pred_check_branch
          %476 = sbr.rel (%p474) target = $region32
        $region31: #{section_model_forward.1} parent=23 // pred_region
          %p477 = scmp.lt.s32.totalorder %s32, 1
          %s478 = scalar_select %p477, %s32, 1
          %s479 = smul.addr %s478, 4
          %s480 = smul.addr %s479, 4
          %s481 = scalar_lea.vmem %s3, %s480
        $region32: #{section_model_forward.1} parent=23 // pred_fallthru
          _
        // Predicated region
        $region33: #{section_model_forward.1} parent=23 // pred_check
          %p482 = pneg %p150
        $region34: #{section_model_forward.1} parent=23 // pred_check_branch
          %484 = sbr.rel (%p482) target = $region36
        $region35: #{section_model_forward.1} parent=23 // pred_region
          %p485 = scmp.lt.s32.totalorder %s32, 1
          %s486 = scalar_select %p485, %s32, 1
          %s487 = scalar_lea.vmem %s4, %s486
        $region36: #{section_model_forward.1} parent=23 // pred_fallthru
          _
        // Predicated region
        $region37: #{section_model_forward.1} parent=23 // pred_check
          %p488 = pneg %p176
        $region38: #{section_model_forward.1} parent=23 // pred_check_branch
          %490 = sbr.rel (%p488) target = $region40
        $region39: #{section_model_forward.1} parent=23 // pred_region
          %p491 = scmp.lt.s32.totalorder %s32, 1
          %s492 = scalar_select %p491, %s32, 1
          %s493 = smul.addr %s492, 4
          %s494 = smul.addr %s493, 4
          %s495 = scalar_lea.vmem %s5, %s494
        $region40: #{section_model_forward.1} parent=23 // pred_fallthru
          _
        // Predicated region
        $region41: #{section_model_forward.1} parent=23 // pred_check
          %p496 = pneg %p202
        $region42: #{section_model_forward.1} parent=23 // pred_check_branch
          %498 = sbr.rel (%p496) target = $region44
        $region43: #{section_model_forward.1} parent=23 // pred_region
          %p499 = scmp.lt.s32.totalorder %s32, 1
          %s500 = scalar_select %p499, %s32, 1
          %s501 = scalar_lea.vmem %s6, %s500
        $region44: #{section_model_forward.1} parent=23 // pred_fallthru
          _
        // Predicated region
        $region45: #{section_model_forward.1} parent=23 // pred_check
          %p502 = pneg %p228
        $region46: #{section_model_forward.1} parent=23 // pred_check_branch
          %504 = sbr.rel (%p502) target = $region48
        $region47: #{section_model_forward.1} parent=23 // pred_region
          %p505 = scmp.lt.s32.totalorder %s32, 1
          %s506 = scalar_select %p505, %s32, 1
          %s507 = scalar_lea.vmem %s7, %s506
        $region48: #{section_model_forward.1} parent=23 // pred_fallthru
          _
        // Predicated region
        $region49: #{section_model_forward.1} parent=23 // pred_check
          %p508 = pneg %p254
        $region50: #{section_model_forward.1} parent=23 // pred_check_branch
          %510 = sbr.rel (%p508) target = $region52
        $region51: #{section_model_forward.1} parent=23 // pred_region
          %p511 = scmp.lt.s32.totalorder %s32, 1
          %s512 = scalar_select %p511, %s32, 1
          %s513 = scalar_lea.vmem %s8, %s512
        $region52: #{section_model_forward.1} parent=23 // pred_fallthru
          _
        // Predicated region
        $region53: #{section_model_forward.1} parent=23 // pred_check
          %p514 = pneg %p280
        $region54: #{section_model_forward.1} parent=23 // pred_check_branch
          %516 = sbr.rel (%p514) target = $region56
        $region55: #{section_model_forward.1} parent=23 // pred_region
          %p517 = scmp.lt.s32.totalorder %s32, 1
          %s518 = scalar_select %p517, %s32, 1
          %s519 = smul.addr %s518, 4
          %s520 = smul.addr %s519, 4
          %s521 = scalar_lea.vmem %s9, %s520
        $region56: #{section_model_forward.1} parent=23 // pred_fallthru
          _
        // Predicated region
        $region57: #{section_model_forward.1} parent=23 // pred_check
          %p522 = pneg %p306
        $region58: #{section_model_forward.1} parent=23 // pred_check_branch
          %524 = sbr.rel (%p522) target = $region60
        $region59: #{section_model_forward.1} parent=23 // pred_region
          %p525 = scmp.lt.s32.totalorder %s32, 1
          %s526 = scalar_select %p525, %s32, 1
          %s527 = scalar_lea.vmem %s10, %s526
        $region60: #{section_model_forward.1} parent=23 // pred_fallthru
          _
        // Predicated region
        $region61: #{section_model_forward.1} parent=23 // pred_check
          %p528 = pneg %p332
        $region62: #{section_model_forward.1} parent=23 // pred_check_branch
          %530 = sbr.rel (%p528) target = $region64
        $region63: #{section_model_forward.1} parent=23 // pred_region
          %p531 = scmp.lt.s32.totalorder %s32, 1
          %s532 = scalar_select %p531, %s32, 1
          %s533 = smul.addr %s532, 8
          %s534 = smul.addr %s533, 4
          %s535 = scalar_lea.vmem %s11, %s534
        $region64: #{section_model_forward.1} parent=23 // pred_fallthru
          _
        // Predicated region
        $region65: #{section_model_forward.1} parent=23 // pred_check
          %p536 = pneg %p358
        $region66: #{section_model_forward.1} parent=23 // pred_check_branch
          %538 = sbr.rel (%p536) target = $region68
        $region67: #{section_model_forward.1} parent=23 // pred_region
          %p539 = scmp.lt.s32.totalorder %s32, 1
          %s540 = scalar_select %p539, %s32, 1
          %s541 = scalar_lea.vmem %s12, %s540
        $region68: #{section_model_forward.1} parent=23 // pred_fallthru
          _
        // Predicated region
        $region69: #{section_model_forward.1} parent=23 // pred_check
          %p542 = pneg %p384
        $region70: #{section_model_forward.1} parent=23 // pred_check_branch
          %544 = sbr.rel (%p542) target = $region72
        $region71: #{section_model_forward.1} parent=23 // pred_region
          %p545 = scmp.lt.s32.totalorder %s32, 1
          %s546 = scalar_select %p545, %s32, 1
          %s547 = scalar_lea.vmem %s13, %s546
        $region72: #{section_model_forward.1} parent=23 // pred_fallthru
          _
        // Predicated region
        $region73: #{section_model_forward.1} parent=23 // pred_check
          %p548 = pneg %p410
        $region74: #{section_model_forward.1} parent=23 // pred_check_branch
          %550 = sbr.rel (%p548) target = $region76
        $region75: #{section_model_forward.1} parent=23 // pred_region
          %p551 = scmp.lt.s32.totalorder %s32, 1
          %s552 = scalar_select %p551, %s32, 1
          %s553 = scalar_lea.vmem %s14, %s552
        $region76: #{section_model_forward.1} parent=23 // pred_fallthru
          _
      $region24: #{section_model_forward.1} parent=5 // pred_fallthru
        _
      %p554 = scmp.le.s32.totalorder 1, %s24
      %p555 = scmp.lt.s32.totalorder %s24, 5
      %p556 = pnand %p554, %p555
      %p557 = pneg %p556
      // Predicated region
      $region77: #{section_model_forward.1} parent=5 // pred_check
        _
      $region78: #{section_model_forward.1} parent=5 // pred_check_branch
        %559 = sbr.rel (%p556) target = $region80
      $region79: #{section_model_forward.1} parent=5 // pred_region
        %s560 = ssub.s32 %s24, 1
        %p561 = scmp.lt.s32.totalorder %s33, 1
        %s562 = scalar_select %p561, %s33, 1
        %s563 = smul.addr %s562, 8
        %s564 = scalar_lea.vmem %s0, %s563
        %p565 = pneg %p62
        %p566 = pneg %p59
        %p567 = pneg %p83
        %p568 = pneg %p80
        %p569 = pneg %p104
        %p570 = pneg %p101
        %p571 = scmp.lt.s32.totalorder %s34, 1
        %s572 = scalar_select %p571, %s34, 1
        %s573 = smul.addr %s572, 4
        %s574 = smul.addr %s573, 4
        %s575 = scalar_lea.vmem %s3, %s574
        %p576 = pneg %p130
        %p577 = pneg %p127
        %p578 = scmp.lt.s32.totalorder %s34, 1
        %s579 = scalar_select %p578, %s34, 1
        %s580 = scalar_lea.vmem %s4, %s579
        %p581 = pneg %p156
        %p582 = pneg %p153
        %p583 = scmp.lt.s32.totalorder %s34, 1
        %s584 = scalar_select %p583, %s34, 1
        %s585 = smul.addr %s584, 4
        %s586 = smul.addr %s585, 4
        %s587 = scalar_lea.vmem %s5, %s586
        %p588 = pneg %p182
        %p589 = pneg %p179
        %p590 = scmp.lt.s32.totalorder %s34, 1
        %s591 = scalar_select %p590, %s34, 1
        %s592 = scalar_lea.vmem %s6, %s591
        %p593 = pneg %p208
        %p594 = pneg %p205
        %p595 = scmp.lt.s32.totalorder %s34, 1
        %s596 = scalar_select %p595, %s34, 1
        %s597 = scalar_lea.vmem %s7, %s596
        %p598 = pneg %p234
        %p599 = pneg %p231
        %p600 = scmp.lt.s32.totalorder %s34, 1
        %s601 = scalar_select %p600, %s34, 1
        %s602 = scalar_lea.vmem %s8, %s601
        %p603 = pneg %p260
        %p604 = pneg %p257
        %p605 = scmp.lt.s32.totalorder %s34, 1
        %s606 = scalar_select %p605, %s34, 1
        %s607 = smul.addr %s606, 4
        %s608 = smul.addr %s607, 4
        %s609 = scalar_lea.vmem %s9, %s608
        %p610 = pneg %p286
        %p611 = pneg %p283
        %p612 = scmp.lt.s32.totalorder %s34, 1
        %s613 = scalar_select %p612, %s34, 1
        %s614 = scalar_lea.vmem %s10, %s613
        %p615 = pneg %p312
        %p616 = pneg %p309
        %p617 = scmp.lt.s32.totalorder %s34, 1
        %s618 = scalar_select %p617, %s34, 1
        %s619 = smul.addr %s618, 8
        %s620 = smul.addr %s619, 4
        %s621 = scalar_lea.vmem %s11, %s620
        %p622 = pneg %p338
        %p623 = pneg %p335
        %p624 = scmp.lt.s32.totalorder %s34, 1
        %s625 = scalar_select %p624, %s34, 1
        %s626 = scalar_lea.vmem %s12, %s625
        %p627 = pneg %p364
        %p628 = pneg %p361
        %p629 = scmp.lt.s32.totalorder %s34, 1
        %s630 = scalar_select %p629, %s34, 1
        %s631 = scalar_lea.vmem %s13, %s630
        %p632 = pneg %p390
        %p633 = pneg %p387
        %p634 = scmp.lt.s32.totalorder %s34, 1
        %s635 = scalar_select %p634, %s34, 1
        %s636 = scalar_lea.vmem %s14, %s635
        %p637 = pneg %p416
        %p638 = pneg %p413
        %p639 = pneg %p442
        %p640 = pneg %p439
        %s641 = sand.u32 %s429, 1
        %s642 = scalar_lea.sflag [#allocation4], %s641
        %s643 = sand.u32 %s429, 1
        %s644 = scalar_lea.vmem [#allocation3], %s643
        %p645 = scmp.lt.s32.totalorder %s33, 1
        %s646 = scalar_select %p645, %s33, 1
        %s647 = smul.addr %s646, 8
        %s648 = scalar_lea.vmem %s0, %s647
        %p649 = scmp.lt.s32.totalorder %s34, 1
        %s650 = scalar_select %p649, %s34, 1
        %s651 = smul.addr %s650, 4
        %s652 = smul.addr %s651, 4
        %s653 = scalar_lea.vmem %s3, %s652
        %p654 = scmp.lt.s32.totalorder %s34, 1
        %s655 = scalar_select %p654, %s34, 1
        %s656 = scalar_lea.vmem %s4, %s655
        %p657 = scmp.lt.s32.totalorder %s34, 1
        %s658 = scalar_select %p657, %s34, 1
        %s659 = smul.addr %s658, 4
        %s660 = smul.addr %s659, 4
        %s661 = scalar_lea.vmem %s5, %s660
        %p662 = scmp.lt.s32.totalorder %s34, 1
        %s663 = scalar_select %p662, %s34, 1
        %s664 = scalar_lea.vmem %s6, %s663
        %p665 = scmp.lt.s32.totalorder %s34, 1
        %s666 = scalar_select %p665, %s34, 1
        %s667 = scalar_lea.vmem %s7, %s666
        %p668 = scmp.lt.s32.totalorder %s34, 1
        %s669 = scalar_select %p668, %s34, 1
        %s670 = scalar_lea.vmem %s8, %s669
        %p671 = scmp.lt.s32.totalorder %s34, 1
        %s672 = scalar_select %p671, %s34, 1
        %s673 = smul.addr %s672, 4
        %s674 = smul.addr %s673, 4
        %s675 = scalar_lea.vmem %s9, %s674
        %p676 = scmp.lt.s32.totalorder %s34, 1
        %s677 = scalar_select %p676, %s34, 1
        %s678 = scalar_lea.vmem %s10, %s677
        %p679 = scmp.lt.s32.totalorder %s34, 1
        %s680 = scalar_select %p679, %s34, 1
        %s681 = smul.addr %s680, 8
        %s682 = smul.addr %s681, 4
        %s683 = scalar_lea.vmem %s11, %s682
        %p684 = scmp.lt.s32.totalorder %s34, 1
        %s685 = scalar_select %p684, %s34, 1
        %s686 = scalar_lea.vmem %s12, %s685
        %p687 = scmp.lt.s32.totalorder %s34, 1
        %s688 = scalar_select %p687, %s34, 1
        %s689 = scalar_lea.vmem %s13, %s688
        %p690 = scmp.lt.s32.totalorder %s34, 1
        %s691 = scalar_select %p690, %s34, 1
        %s692 = scalar_lea.vmem %s14, %s691
        %p694 = scmp.eq.s32.totalorder %s34, 0
        // Predicated region
        $region81: #{section_model_forward.1} parent=79 // pred_check
          %p695 = pneg %p694
        $region82: #{section_model_forward.1} parent=79 // pred_check_branch
          %697 = sbr.rel (%p695) target = $region84
        $region83: #{section_model_forward.1} parent=79 // pred_region
          %v698 = vld [vmem:[%s648] sm:$0xff]
          %v699 = vld [vmem:[%s1] sm:$0x1]
          %v700 = vld [vmem:[%s2] sm:$0x1]
          %vm701 = vcmask 261120
          %v702 = vsel %vm701, %v698, 0.0
          %703 = vadd.xlane.f32.xlu0 %v702
          %v704 = vpop.xlane.xlu0 %703
          %v705 = vrcp.pop 32.0
          %v706 = vmul.f32 %v704, %v705
          %v707 = vsub.f32 %v698, %v706
          %v708 = vmul.f32 %v707, %v707
          %v709 = vsel %vm701, %v708, 0.0
          %710 = vadd.xlane.f32.xlu0 %v709
          %v711 = vpop.xlane.xlu0 %710
          %v712 = vmul.f32 %v711, %v705
          %v713 = vadd.f32 %v712, 1e-12
          %v714 = vrsqrt.pop %v713
          %v715 = vmul.f32 %v707, %v714
          %v717 = vlaneseq
          %v718 = vshrl.u32 %v717, 7
          %v719 = vsub.s32 0, %v718
          %v720 = vrot.slane %v699, %v719
          %v722 = vmul.f32 %v715, %v720
          %v724 = vlaneseq
          %v725 = vshrl.u32 %v724, 7
          %v726 = vsub.s32 0, %v725
          %v727 = vrot.slane %v700, %v726
          %v729 = vadd.f32 %v722, %v727
          %730 = vst.msk [vmem:[#allocation2] sm:$0xff] %vm701, %v729
        $region84: #{section_model_forward.1} parent=79 // pred_fallthru
          _
        %v731 = vld [vmem:[#allocation2] sm:$0xff]
        %v732 = vpack.c.bf16 %v731, %v731
        %v733 = vld [vmem:[%s653] sm:$0xf]
        %v734 = vld [vmem:[%s653 + $0x4] sm:$0xf]
        %v735 = vld [vmem:[%s653 + $0x8] sm:$0xf]
        %v736 = vld [vmem:[%s653 + $0xc] sm:$0xf]
        %v737 = vld [vmem:[%s656] sm:$0x1]
        %v739 = vlaneseq
        %v740 = vshrl.u32 %v739, 7
        %v741 = vsub.s32 0, %v740
        %v742 = vrot.slane %v737, %v741
        %v748 = vunpack.c.l.b16 %v733
        %v749 = vunpack.c.l.b16 %v734
        %v750 = vunpack.c.l.b16 %v735
        %v751 = vunpack.c.l.b16 %v736
        %v752 = vpack.c.b16 %v749, %v748
        %v753 = vpack.c.b16 %v751, %v750
        %vm756 = vcmask 261120
        %v758 = vsel %vm756, %v732, 0
        %760 = vmatprep.subr.bf16.mxu0 0
        %761 = vmatpush1.bf16.msra.mxu0 0
        %762 = vmatprep.subr.bf16.mxu0 0
        %763 = vmatpush1.bf16.msra.mxu0 0
        %764 = vmatprep.subr.bf16.mxu0 0
        %765 = vmatpush1.bf16.msra.mxu0 0
        %766 = vmatprep.subr.bf16.mxu0 0
        %767 = vmatpush1.bf16.msra.mxu0 0
        %768 = vmatprep.subr.bf16.mxu0 0
        %769 = vmatpush1.bf16.msra.mxu0 0
        %770 = vmatprep.subr.bf16.mxu0 0
        %771 = vmatpush1.bf16.msra.mxu0 0
        %772 = vmatprep.subr.bf16.mxu0 0
        %773 = vmatpush1.bf16.msra.mxu0 %v753
        %774 = vmatprep.subr.bf16.mxu0 0
        %775 = vmatpush1.bf16.msra.mxu0 %v752
        %776 = vmatprep.subr.bf16.mxu0 0
        %777 = vmatpush2.bf16.msra.mxu0 0
        %778 = vmatprep.subr.bf16.mxu0 0
        %779 = vmatpush2.bf16.msra.mxu0 0
        %780 = vmatprep.subr.bf16.mxu0 0
        %781 = vmatpush2.bf16.msra.mxu0 0
        %782 = vmatprep.subr.bf16.mxu0 0
        %783 = vmatpush2.bf16.msra.mxu0 0
        %784 = vmatprep.subr.bf16.mxu0 0
        %785 = vmatpush2.bf16.msra.mxu0 0
        %786 = vmatprep.subr.bf16.mxu0 0
        %787 = vmatpush2.bf16.msra.mxu0 0
        %788 = vmatprep.subr.bf16.mxu0 0
        %789 = vmatpush2.bf16.msra.mxu0 0
        %790 = vmatprep.subr.bf16.mxu0 0
        %791 = vmatpush2.bf16.msra.mxu0 0
        %792 = vmatprep.mubr.bf16.mxu0 0
        %793 = vmatmul.mubr.bf16.gmra.mxu0 %v758
        %v794 = vpop.f32.mrf.mxu0
        %v795 = vadd.f32 %v742, %v794
        %v796 = vpop.f32.mrf.mxu0
        %v797 = vpop.f32.mrf.mxu0
        %v798 = vpop.f32.mrf.mxu0
        %799 = vdwg.mxu0
        %v800 = vld [vmem:[%s661] sm:$0xf]
        %v801 = vld [vmem:[%s661 + $0x4] sm:$0xf]
        %v802 = vld [vmem:[%s661 + $0x8] sm:$0xf]
        %v803 = vld [vmem:[%s661 + $0xc] sm:$0xf]
        %v804 = vpack.c.bf16 %v795, %v795
        %806 = vrot.lane.b32.xlu0 %v804, 96
        %v807 = vpop.permute.xlu0 %806
        %vm808 = vcmask 130048
        %v810 = vsel %vm808, %v804, 0
        %v813 = vsel %vm808, %v807, 0
        %815 = vmatprep.subr.bf16.mxu0 0
        %816 = vmatpush1.bf16.xpose.msra.mxu0 0
        %817 = vmatprep.subr.bf16.mxu0 0
        %818 = vmatpush1.bf16.xpose.msra.mxu0 0
        %819 = vmatprep.subr.bf16.mxu0 0
        %820 = vmatpush1.bf16.xpose.msra.mxu0 0
        %821 = vmatprep.subr.bf16.mxu0 0
        %822 = vmatpush1.bf16.xpose.msra.mxu0 0
        %823 = vmatprep.subr.bf16.mxu0 0
        %824 = vmatpush1.bf16.xpose.msra.mxu0 0
        %825 = vmatprep.subr.bf16.mxu0 0
        %826 = vmatpush1.bf16.xpose.msra.mxu0 0
        %827 = vmatprep.subr.bf16.mxu0 0
        %828 = vmatpush1.bf16.xpose.msra.mxu0 0
        %829 = vmatprep.subr.bf16.mxu0 0
        %830 = vmatpush1.bf16.xpose.msra.mxu0 %v813
        %831 = vmatprep.subr.bf16.mxu0 0
        %832 = vmatpush2.bf16.xpose.msra.mxu0 0
        %833 = vmatprep.subr.bf16.mxu0 0
        %834 = vmatpush2.bf16.xpose.msra.mxu0 0
        %835 = vmatprep.subr.bf16.mxu0 0
        %836 = vmatpush2.bf16.xpose.msra.mxu0 0
        %837 = vmatprep.subr.bf16.mxu0 0
        %838 = vmatpush2.bf16.xpose.msra.mxu0 0
        %839 = vmatprep.subr.bf16.mxu0 0
        %840 = vmatpush2.bf16.xpose.msra.mxu0 0
        %841 = vmatprep.subr.bf16.mxu0 0
        %842 = vmatpush2.bf16.xpose.msra.mxu0 0
        %843 = vmatprep.subr.bf16.mxu0 0
        %844 = vmatpush2.bf16.xpose.msra.mxu0 0
        %845 = vmatprep.subr.bf16.mxu0 0
        %846 = vmatpush2.bf16.xpose.msra.mxu0 0
        %847 = vmatprep.mubr.bf16.mxu0 0
        %848 = vmatmul.mubr.bf16.gmra.mxu0 %v810
        %v849 = vpop.f32.mrf.mxu0
        %v850 = vadd.f32 0.0, %v849
        %v851 = vpop.f32.mrf.mxu0
        %v852 = vpop.f32.mrf.mxu0
        %v853 = vpop.f32.mrf.mxu0
        %854 = vdwg.mxu0
        %v855 = vmul.f32 %v850, 0.25
        %vm856 = vcmask 64512
        %v857 = vsel %vm856, %v855, -inf
        %858 = vmax.xlane.f32.xlu0 %v857
        %v859 = vpop.xlane.xlu0 %858
        %v860 = vsub.f32 %v855, %v859
        %v861 = vmul.f32 %v860, 1.442695
        %v862 = vpow.pop %v861
        %v863 = vsel %vm856, %v862, 0.0
        %864 = vadd.xlane.f32.xlu0 %v863
        %v865 = vpop.xlane.xlu0 %864
        %v866 = vrcp.pop %v865
        %v867 = vmul.f32 %v862, %v866
        %v868 = vpack.c.bf16 %v867, %v867
        %869 = vrot.lane.b32.xlu0 %v804, 64
        %v870 = vpop.permute.xlu0 %869
        %v872 = vsel %vm856, %v868, 0
        %vm874 = vcmask 1043456
        %v876 = vsel %vm874, %v870, 0
        %878 = vmatprep.subr.bf16.mxu0 0
        %879 = vmatpush1.bf16.msra.mxu0 0
        %880 = vmatprep.subr.bf16.mxu0 0
        %881 = vmatpush1.bf16.msra.mxu0 0
        %882 = vmatprep.subr.bf16.mxu0 0
        %883 = vmatpush1.bf16.msra.mxu0 0
        %884 = vmatprep.subr.bf16.mxu0 0
        %885 = vmatpush1.bf16.msra.mxu0 0
        %886 = vmatprep.subr.bf16.mxu0 0
        %887 = vmatpush1.bf16.msra.mxu0 0
        %888 = vmatprep.subr.bf16.mxu0 0
        %889 = vmatpush1.bf16.msra.mxu0 0
        %890 = vmatprep.subr.bf16.mxu0 0
        %891 = vmatpush1.bf16.msra.mxu0 0
        %892 = vmatprep.subr.bf16.mxu0 0
        %893 = vmatpush1.bf16.msra.mxu0 %v876
        %894 = vmatprep.subr.bf16.mxu0 0
        %895 = vmatpush2.bf16.msra.mxu0 0
        %896 = vmatprep.subr.bf16.mxu0 0
        %897 = vmatpush2.bf16.msra.mxu0 0
        %898 = vmatprep.subr.bf16.mxu0 0
        %899 = vmatpush2.bf16.msra.mxu0 0
        %900 = vmatprep.subr.bf16.mxu0 0
        %901 = vmatpush2.bf16.msra.mxu0 0
        %902 = vmatprep.subr.bf16.mxu0 0
        %903 = vmatpush2.bf16.msra.mxu0 0
        %904 = vmatprep.subr.bf16.mxu0 0
        %905 = vmatpush2.bf16.msra.mxu0 0
        %906 = vmatprep.subr.bf16.mxu0 0
        %907 = vmatpush2.bf16.msra.mxu0 0
        %908 = vmatprep.subr.bf16.mxu0 0
        %909 = vmatpush2.bf16.msra.mxu0 0
        %910 = vmatprep.mubr.bf16.mxu0 0
        %911 = vmatmul.mubr.bf16.gmra.mxu0 %v872
        %v912 = vpop.f32.mrf.mxu0
        %v913 = vadd.f32 0.0, %v912
        %v914 = vpop.f32.mrf.mxu0
        %v915 = vpop.f32.mrf.mxu0
        %v916 = vpop.f32.mrf.mxu0
        %917 = vdwg.mxu0
        %v918 = vpack.c.bf16 %v913, %v913
        %919 = vrot.lane.b32.xlu0 %v804, 112
        %v920 = vpop.permute.xlu0 %919
        %921 = vrot.lane.b32.xlu0 %v804, 80
        %v922 = vpop.permute.xlu0 %921
        %v924 = vsel %vm808, %v920, 0
        %v927 = vsel %vm808, %v922, 0
        %929 = vmatprep.subr.bf16.mxu0 0
        %930 = vmatpush1.bf16.xpose.msra.mxu0 0
        %931 = vmatprep.subr.bf16.mxu0 0
        %932 = vmatpush1.bf16.xpose.msra.mxu0 0
        %933 = vmatprep.subr.bf16.mxu0 0
        %934 = vmatpush1.bf16.xpose.msra.mxu0 0
        %935 = vmatprep.subr.bf16.mxu0 0
        %936 = vmatpush1.bf16.xpose.msra.mxu0 0
        %937 = vmatprep.subr.bf16.mxu0 0
        %938 = vmatpush1.bf16.xpose.msra.mxu0 0
        %939 = vmatprep.subr.bf16.mxu0 0
        %940 = vmatpush1.bf16.xpose.msra.mxu0 0
        %941 = vmatprep.subr.bf16.mxu0 0
        %942 = vmatpush1.bf16.xpose.msra.mxu0 0
        %943 = vmatprep.subr.bf16.mxu0 0
        %944 = vmatpush1.bf16.xpose.msra.mxu0 %v927
        %945 = vmatprep.subr.bf16.mxu0 0
        %946 = vmatpush2.bf16.xpose.msra.mxu0 0
        %947 = vmatprep.subr.bf16.mxu0 0
        %948 = vmatpush2.bf16.xpose.msra.mxu0 0
        %949 = vmatprep.subr.bf16.mxu0 0
        %950 = vmatpush2.bf16.xpose.msra.mxu0 0
        %951 = vmatprep.subr.bf16.mxu0 0
        %952 = vmatpush2.bf16.xpose.msra.mxu0 0
        %953 = vmatprep.subr.bf16.mxu0 0
        %954 = vmatpush2.bf16.xpose.msra.mxu0 0
        %955 = vmatprep.subr.bf16.mxu0 0
        %956 = vmatpush2.bf16.xpose.msra.mxu0 0
        %957 = vmatprep.subr.bf16.mxu0 0
        %958 = vmatpush2.bf16.xpose.msra.mxu0 0
        %959 = vmatprep.subr.bf16.mxu0 0
        %960 = vmatpush2.bf16.xpose.msra.mxu0 0
        %961 = vmatprep.mubr.bf16.mxu0 0
        %962 = vmatmul.mubr.bf16.gmra.mxu0 %v924
        %v963 = vpop.f32.mrf.mxu0
        %v964 = vadd.f32 0.0, %v963
        %v965 = vpop.f32.mrf.mxu0
        %v966 = vpop.f32.mrf.mxu0
        %v967 = vpop.f32.mrf.mxu0
        %968 = vdwg.mxu0
        %v969 = vmul.f32 %v964, 0.25
        %v970 = vsel %vm856, %v969, -inf
        %971 = vmax.xlane.f32.xlu0 %v970
        %v972 = vpop.xlane.xlu0 %971
        %v973 = vsub.f32 %v969, %v972
        %v974 = vmul.f32 %v973, 1.442695
        %v975 = vpow.pop %v974
        %v976 = vsel %vm856, %v975, 0.0
        %977 = vadd.xlane.f32.xlu0 %v976
        %v978 = vpop.xlane.xlu0 %977
        %v979 = vrcp.pop %v978
        %v980 = vmul.f32 %v975, %v979
        %v981 = vpack.c.bf16 %v980, %v980
        %982 = vrot.lane.b32.xlu0 %v804, 48
        %v983 = vpop.permute.xlu0 %982
        %v985 = vsel %vm856, %v981, 0
        %v988 = vsel %vm874, %v983, 0
        %990 = vmatprep.subr.bf16.mxu0 0
        %991 = vmatpush1.bf16.msra.mxu0 0
        %992 = vmatprep.subr.bf16.mxu0 0
        %993 = vmatpush1.bf16.msra.mxu0 0
        %994 = vmatprep.subr.bf16.mxu0 0
        %995 = vmatpush1.bf16.msra.mxu0 0
        %996 = vmatprep.subr.bf16.mxu0 0
        %997 = vmatpush1.bf16.msra.mxu0 0
        %998 = vmatprep.subr.bf16.mxu0 0
        %999 = vmatpush1.bf16.msra.mxu0 0
        %1000 = vmatprep.subr.bf16.mxu0 0
        %1001 = vmatpush1.bf16.msra.mxu0 0
        %1002 = vmatprep.subr.bf16.mxu0 0
        %1003 = vmatpush1.bf16.msra.mxu0 0
        %1004 = vmatprep.subr.bf16.mxu0 0
        %1005 = vmatpush1.bf16.msra.mxu0 %v988
        %1006 = vmatprep.subr.bf16.mxu0 0
        %1007 = vmatpush2.bf16.msra.mxu0 0
        %1008 = vmatprep.subr.bf16.mxu0 0
        %1009 = vmatpush2.bf16.msra.mxu0 0
        %1010 = vmatprep.subr.bf16.mxu0 0
        %1011 = vmatpush2.bf16.msra.mxu0 0
        %1012 = vmatprep.subr.bf16.mxu0 0
        %1013 = vmatpush2.bf16.msra.mxu0 0
        %1014 = vmatprep.subr.bf16.mxu0 0
        %1015 = vmatpush2.bf16.msra.mxu0 0
        %1016 = vmatprep.subr.bf16.mxu0 0
        %1017 = vmatpush2.bf16.msra.mxu0 0
        %1018 = vmatprep.subr.bf16.mxu0 0
        %1019 = vmatpush2.bf16.msra.mxu0 0
        %1020 = vmatprep.subr.bf16.mxu0 0
        %1021 = vmatpush2.bf16.msra.mxu0 0
        %1022 = vmatprep.mubr.bf16.mxu0 0
        %1023 = vmatmul.mubr.bf16.gmra.mxu0 %v985
        %v1024 = vpop.f32.mrf.mxu0
        %v1025 = vadd.f32 0.0, %v1024
        %v1026 = vpop.f32.mrf.mxu0
        %v1027 = vpop.f32.mrf.mxu0
        %v1028 = vpop.f32.mrf.mxu0
        %1029 = vdwg.mxu0
        %v1030 = vpack.c.bf16 %v1025, %v1025
        %v1033 = vunpack.c.l.b16 %v802
        %v1034 = vunpack.c.l.b16 %v803
        %v1035 = vpack.c.b16 %v1034, %v1033
        %v1038 = vsel %vm808, %v1030, 0
        %1040 = vmatprep.subr.bf16.mxu0 0
        %1041 = vmatpush1.bf16.msra.mxu0 0
        %1042 = vmatprep.subr.bf16.mxu0 0
        %1043 = vmatpush1.bf16.msra.mxu0 0
        %1044 = vmatprep.subr.bf16.mxu0 0
        %1045 = vmatpush1.bf16.msra.mxu0 0
        %1046 = vmatprep.subr.bf16.mxu0 0
        %1047 = vmatpush1.bf16.msra.mxu0 0
        %1048 = vmatprep.subr.bf16.mxu0 0
        %1049 = vmatpush1.bf16.msra.mxu0 0
        %1050 = vmatprep.subr.bf16.mxu0 0
        %1051 = vmatpush1.bf16.msra.mxu0 0
        %1052 = vmatprep.subr.bf16.mxu0 0
        %1053 = vmatpush1.bf16.msra.mxu0 0
        %1054 = vmatprep.subr.bf16.mxu0 0
        %1055 = vmatpush1.bf16.msra.mxu0 %v1035
        %1056 = vmatprep.subr.bf16.mxu0 0
        %1057 = vmatpush2.bf16.msra.mxu0 0
        %1058 = vmatprep.subr.bf16.mxu0 0
        %1059 = vmatpush2.bf16.msra.mxu0 0
        %1060 = vmatprep.subr.bf16.mxu0 0
        %1061 = vmatpush2.bf16.msra.mxu0 0
        %1062 = vmatprep.subr.bf16.mxu0 0
        %1063 = vmatpush2.bf16.msra.mxu0 0
        %1064 = vmatprep.subr.bf16.mxu0 0
        %1065 = vmatpush2.bf16.msra.mxu0 0
        %1066 = vmatprep.subr.bf16.mxu0 0
        %1067 = vmatpush2.bf16.msra.mxu0 0
        %1068 = vmatprep.subr.bf16.mxu0 0
        %1069 = vmatpush2.bf16.msra.mxu0 0
        %1070 = vmatprep.subr.bf16.mxu0 0
        %1071 = vmatpush2.bf16.msra.mxu0 0
        %1072 = vmatprep.mubr.bf16.mxu0 0
        %1073 = vmatmul.mubr.bf16.gmra.mxu0 %v1038
        %v1074 = vpop.f32.mrf.mxu0
        %v1075 = vadd.f32 0.0, %v1074
        %v1076 = vpop.f32.mrf.mxu0
        %v1077 = vpop.f32.mrf.mxu0
        %v1078 = vpop.f32.mrf.mxu0
        %1079 = vdwg.mxu0
        %v1082 = vunpack.c.l.b16 %v800
        %v1083 = vunpack.c.l.b16 %v801
        %v1084 = vpack.c.b16 %v1083, %v1082
        %v1087 = vsel %vm808, %v918, 0
        %1089 = vmatprep.subr.bf16.mxu0 0
        %1090 = vmatpush1.bf16.msra.mxu0 0
        %1091 = vmatprep.subr.bf16.mxu0 0
        %1092 = vmatpush1.bf16.msra.mxu0 0
        %1093 = vmatprep.subr.bf16.mxu0 0
        %1094 = vmatpush1.bf16.msra.mxu0 0
        %1095 = vmatprep.subr.bf16.mxu0 0
        %1096 = vmatpush1.bf16.msra.mxu0 0
        %1097 = vmatprep.subr.bf16.mxu0 0
        %1098 = vmatpush1.bf16.msra.mxu0 0
        %1099 = vmatprep.subr.bf16.mxu0 0
        %1100 = vmatpush1.bf16.msra.mxu0 0
        %1101 = vmatprep.subr.bf16.mxu0 0
        %1102 = vmatpush1.bf16.msra.mxu0 0
        %1103 = vmatprep.subr.bf16.mxu0 0
        %1104 = vmatpush1.bf16.msra.mxu0 %v1084
        %1105 = vmatprep.subr.bf16.mxu0 0
        %1106 = vmatpush2.bf16.msra.mxu0 0
        %1107 = vmatprep.subr.bf16.mxu0 0
        %1108 = vmatpush2.bf16.msra.mxu0 0
        %1109 = vmatprep.subr.bf16.mxu0 0
        %1110 = vmatpush2.bf16.msra.mxu0 0
        %1111 = vmatprep.subr.bf16.mxu0 0
        %1112 = vmatpush2.bf16.msra.mxu0 0
        %1113 = vmatprep.subr.bf16.mxu0 0
        %1114 = vmatpush2.bf16.msra.mxu0 0
        %1115 = vmatprep.subr.bf16.mxu0 0
        %1116 = vmatpush2.bf16.msra.mxu0 0
        %1117 = vmatprep.subr.bf16.mxu0 0
        %1118 = vmatpush2.bf16.msra.mxu0 0
        %1119 = vmatprep.subr.bf16.mxu0 0
        %1120 = vmatpush2.bf16.msra.mxu0 0
        %1121 = vmatprep.mubr.bf16.mxu0 0
        %1122 = vmatmul.mubr.bf16.gmra.mxu0 %v1087
        %v1123 = vpop.f32.mrf.mxu0
        %v1124 = vadd.f32 %v1075, %v1123
        %v1125 = vpop.f32.mrf.mxu0
        %v1126 = vpop.f32.mrf.mxu0
        %v1127 = vpop.f32.mrf.mxu0
        %1128 = vdwg.mxu0
        %v1129 = vld [vmem:[%s664] sm:$0x1]
        %v1131 = vlaneseq
        %v1132 = vshrl.u32 %v1131, 7
        %v1133 = vsub.s32 0, %v1132
        %v1134 = vrot.slane %v1129, %v1133
        %v1136 = vadd.f32 %v1124, %v1134
        %v1137 = vadd.f32 %v1136, %v731
        %v1138 = vld [vmem:[%s667] sm:$0x1]
        %v1139 = vld [vmem:[%s670] sm:$0x1]
        %v1140 = vsel %vm756, %v1137, 0.0
        %1141 = vadd.xlane.f32.xlu0 %v1140
        %v1142 = vpop.xlane.xlu0 %1141
        %v1143 = vrcp.pop 32.0
        %v1144 = vmul.f32 %v1142, %v1143
        %v1145 = vsub.f32 %v1137, %v1144
        %v1146 = vmul.f32 %v1145, %v1145
        %v1147 = vsel %vm756, %v1146, 0.0
        %1148 = vadd.xlane.f32.xlu0 %v1147
        %v1149 = vpop.xlane.xlu0 %1148
        %v1150 = vmul.f32 %v1149, %v1143
        %v1151 = vadd.f32 %v1150, 1e-12
        %v1152 = vrsqrt.pop %v1151
        %v1153 = vmul.f32 %v1145, %v1152
        %v1155 = vlaneseq
        %v1156 = vshrl.u32 %v1155, 7
        %v1157 = vsub.s32 0, %v1156
        %v1158 = vrot.slane %v1138, %v1157
        %v1160 = vmul.f32 %v1153, %v1158
        %v1162 = vlaneseq
        %v1163 = vshrl.u32 %v1162, 7
        %v1164 = vsub.s32 0, %v1163
        %v1165 = vrot.slane %v1139, %v1164
        %v1167 = vadd.f32 %v1160, %v1165
        %v1168 = vpack.c.bf16 %v1167, %v1167
        %v1169 = vld [vmem:[%s675] sm:$0xf]
        %v1170 = vld [vmem:[%s675 + $0x4] sm:$0xf]
        %v1171 = vld [vmem:[%s675 + $0x8] sm:$0xf]
        %v1172 = vld [vmem:[%s675 + $0xc] sm:$0xf]
        %v1173 = vld [vmem:[%s678] sm:$0x1]
        %v1175 = vlaneseq
        %v1176 = vshrl.u32 %v1175, 7
        %v1177 = vsub.s32 0, %v1176
        %v1178 = vrot.slane %v1173, %v1177
        %v1184 = vunpack.c.l.b16 %v1169
        %v1185 = vunpack.c.l.b16 %v1170
        %v1186 = vunpack.c.l.b16 %v1171
        %v1187 = vunpack.c.l.b16 %v1172
        %v1188 = vpack.c.b16 %v1185, %v1184
        %v1189 = vpack.c.b16 %v1187, %v1186
        %v1193 = vsel %vm756, %v1168, 0
        %1195 = vmatprep.subr.bf16.mxu0 0
        %1196 = vmatpush1.bf16.msra.mxu0 0
        %1197 = vmatprep.subr.bf16.mxu0 0
        %1198 = vmatpush1.bf16.msra.mxu0 0
        %1199 = vmatprep.subr.bf16.mxu0 0
        %1200 = vmatpush1.bf16.msra.mxu0 0
        %1201 = vmatprep.subr.bf16.mxu0 0
        %1202 = vmatpush1.bf16.msra.mxu0 0
        %1203 = vmatprep.subr.bf16.mxu0 0
        %1204 = vmatpush1.bf16.msra.mxu0 0
        %1205 = vmatprep.subr.bf16.mxu0 0
        %1206 = vmatpush1.bf16.msra.mxu0 0
        %1207 = vmatprep.subr.bf16.mxu0 0
        %1208 = vmatpush1.bf16.msra.mxu0 %v1189
        %1209 = vmatprep.subr.bf16.mxu0 0
        %1210 = vmatpush1.bf16.msra.mxu0 %v1188
        %1211 = vmatprep.subr.bf16.mxu0 0
        %1212 = vmatpush2.bf16.msra.mxu0 0
        %1213 = vmatprep.subr.bf16.mxu0 0
        %1214 = vmatpush2.bf16.msra.mxu0 0
        %1215 = vmatprep.subr.bf16.mxu0 0
        %1216 = vmatpush2.bf16.msra.mxu0 0
        %1217 = vmatprep.subr.bf16.mxu0 0
        %1218 = vmatpush2.bf16.msra.mxu0 0
        %1219 = vmatprep.subr.bf16.mxu0 0
        %1220 = vmatpush2.bf16.msra.mxu0 0
        %1221 = vmatprep.subr.bf16.mxu0 0
        %1222 = vmatpush2.bf16.msra.mxu0 0
        %1223 = vmatprep.subr.bf16.mxu0 0
        %1224 = vmatpush2.bf16.msra.mxu0 0
        %1225 = vmatprep.subr.bf16.mxu0 0
        %1226 = vmatpush2.bf16.msra.mxu0 0
        %1227 = vmatprep.mubr.bf16.mxu0 0
        %1228 = vmatmul.mubr.bf16.gmra.mxu0 %v1193
        %v1229 = vpop.f32.mrf.mxu0
        %v1230 = vadd.f32 %v1178, %v1229
        %v1231 = vpop.f32.mrf.mxu0
        %v1232 = vpop.f32.mrf.mxu0
        %v1233 = vpop.f32.mrf.mxu0
        %1234 = vdwg.mxu0
        %v1235 = vmul.f32 %v1230, 0.5
        %v1236 = vmul.f32 %v1230, 0.044715
        %v1237 = vmul.f32 %v1236, %v1230
        %v1238 = vmul.f32 %v1237, %v1230
        %v1239 = vadd.f32 %v1230, %v1238
        %v1240 = vmul.f32 %v1239, 0.7978846
        %v1241 = vtanh.pop %v1240
        %v1242 = vadd.f32 %v1241, 1.0
        %v1243 = vmul.f32 %v1235, %v1242
        %v1244 = vpack.c.bf16 %v1243, %v1243
        %v1245 = vld [vmem:[%s683] sm:$0xf]
        %v1246 = vld [vmem:[%s683 + $0x4] sm:$0xf]
        %v1247 = vld [vmem:[%s683 + $0x8] sm:$0xf]
        %v1248 = vld [vmem:[%s683 + $0xc] sm:$0xf]
        %v1249 = vld [vmem:[%s683 + $0x10] sm:$0xf]
        %v1250 = vld [vmem:[%s683 + $0x14] sm:$0xf]
        %v1251 = vld [vmem:[%s683 + $0x18] sm:$0xf]
        %v1252 = vld [vmem:[%s683 + $0x1c] sm:$0xf]
        %v1253 = vld [vmem:[%s686] sm:$0x1]
        %v1255 = vlaneseq
        %v1256 = vshrl.u32 %v1255, 7
        %v1257 = vsub.s32 0, %v1256
        %v1258 = vrot.slane %v1253, %v1257
        %v1268 = vunpack.c.l.b16 %v1245
        %v1269 = vunpack.c.l.b16 %v1246
        %v1270 = vunpack.c.l.b16 %v1247
        %v1271 = vunpack.c.l.b16 %v1248
        %v1272 = vunpack.c.l.b16 %v1249
        %v1273 = vunpack.c.l.b16 %v1250
        %v1274 = vunpack.c.l.b16 %v1251
        %v1275 = vunpack.c.l.b16 %v1252
        %v1276 = vpack.c.b16 %v1269, %v1268
        %v1277 = vpack.c.b16 %v1271, %v1270
        %v1278 = vpack.c.b16 %v1273, %v1272
        %v1279 = vpack.c.b16 %v1275, %v1274
        %vm1284 = vcmask 523264
        %v1286 = vsel %vm1284, %v1244, 0
        %1288 = vmatprep.subr.bf16.mxu0 0
        %1289 = vmatpush1.bf16.msra.mxu0 0
        %1290 = vmatprep.subr.bf16.mxu0 0
        %1291 = vmatpush1.bf16.msra.mxu0 0
        %1292 = vmatprep.subr.bf16.mxu0 0
        %1293 = vmatpush1.bf16.msra.mxu0 0
        %1294 = vmatprep.subr.bf16.mxu0 0
        %1295 = vmatpush1.bf16.msra.mxu0 0
        %1296 = vmatprep.subr.bf16.mxu0 0
        %1297 = vmatpush1.bf16.msra.mxu0 %v1279
        %1298 = vmatprep.subr.bf16.mxu0 0
        %1299 = vmatpush1.bf16.msra.mxu0 %v1278
        %1300 = vmatprep.subr.bf16.mxu0 0
        %1301 = vmatpush1.bf16.msra.mxu0 %v1277
        %1302 = vmatprep.subr.bf16.mxu0 0
        %1303 = vmatpush1.bf16.msra.mxu0 %v1276
        %1304 = vmatprep.subr.bf16.mxu0 0
        %1305 = vmatpush2.bf16.msra.mxu0 0
        %1306 = vmatprep.subr.bf16.mxu0 0
        %1307 = vmatpush2.bf16.msra.mxu0 0
        %1308 = vmatprep.subr.bf16.mxu0 0
        %1309 = vmatpush2.bf16.msra.mxu0 0
        %1310 = vmatprep.subr.bf16.mxu0 0
        %1311 = vmatpush2.bf16.msra.mxu0 0
        %1312 = vmatprep.subr.bf16.mxu0 0
        %1313 = vmatpush2.bf16.msra.mxu0 0
        %1314 = vmatprep.subr.bf16.mxu0 0
        %1315 = vmatpush2.bf16.msra.mxu0 0
        %1316 = vmatprep.subr.bf16.mxu0 0
        %1317 = vmatpush2.bf16.msra.mxu0 0
        %1318 = vmatprep.subr.bf16.mxu0 0
        %1319 = vmatpush2.bf16.msra.mxu0 0
        %1320 = vmatprep.mubr.bf16.mxu0 0
        %1321 = vmatmul.mubr.bf16.gmra.mxu0 %v1286
        %v1322 = vpop.f32.mrf.mxu0
        %v1323 = vadd.f32 %v1258, %v1322
        %v1324 = vpop.f32.mrf.mxu0
        %v1325 = vpop.f32.mrf.mxu0
        %v1326 = vpop.f32.mrf.mxu0
        %1327 = vdwg.mxu0
        %v1328 = vadd.f32 %v1323, %v1167
        %v1329 = vld [vmem:[%s689] sm:$0x1]
        %v1330 = vld [vmem:[%s692] sm:$0x1]
        %v1331 = vsel %vm756, %v1328, 0.0
        %1332 = vadd.xlane.f32.xlu0 %v1331
        %v1333 = vpop.xlane.xlu0 %1332
        %v1334 = vmul.f32 %v1333, %v1143
        %v1335 = vsub.f32 %v1328, %v1334
        %v1336 = vmul.f32 %v1335, %v1335
        %v1337 = vsel %vm756, %v1336, 0.0
        %1338 = vadd.xlane.f32.xlu0 %v1337
        %v1339 = vpop.xlane.xlu0 %1338
        %v1340 = vmul.f32 %v1339, %v1143
        %v1341 = vadd.f32 %v1340, 1e-12
        %v1342 = vrsqrt.pop %v1341
        %v1343 = vmul.f32 %v1335, %v1342
        %v1345 = vlaneseq
        %v1346 = vshrl.u32 %v1345, 7
        %v1347 = vsub.s32 0, %v1346
        %v1348 = vrot.slane %v1329, %v1347
        %v1350 = vmul.f32 %v1343, %v1348
        %v1352 = vlaneseq
        %v1353 = vshrl.u32 %v1352, 7
        %v1354 = vsub.s32 0, %v1353
        %v1355 = vrot.slane %v1330, %v1354
        %v1357 = vadd.f32 %v1350, %v1355
        %1358 = vst.msk [vmem:[#allocation2] sm:$0xff] %vm756, %v1357
        %p1359 = scmp.eq.s32.totalorder %s34, 1
        // Predicated region
        $region85: #{section_model_forward.1} parent=79 // pred_check
          %p1360 = pneg %p1359
        $region86: #{section_model_forward.1} parent=79 // pred_check_branch
          %1362 = sbr.rel (%p1360) target = $region88
        $region87: #{section_model_forward.1} parent=79 // pred_region
          %v1363 = vsel %vm756, %v1357, 0.0
          %v1364 = vrot.slane %v1363, 4
          %v1365 = vadd.f32 %v1363, %v1364
          %v1366 = vrot.slane %v1365, 2
          %v1367 = vadd.f32 %v1365, %v1366
          %v1368 = vrot.slane %v1367, 1
          %v1369 = vadd.f32 %v1367, %v1368
          %v1370 = vrcp.pop 8.0
          %v1371 = vmul.f32 %v1369, %v1370
          %vm1372 = vcmask 253952
          %1373 = vst.msk [vmem:[%s644] sm:$0x1] %vm1372, %v1371
        $region88: #{section_model_forward.1} parent=79 // pred_fallthru
          _
        %s1374 = sand.u32 %s429, 1
        %s1375 = scalar_lea.sflag [#allocation4], %s1374
        %s1376 = sand.u32 %s429, 1
        %s1377 = scalar_lea.vmem [#allocation3], %s1376
        // Predicated region
        $region89: #{section_model_forward.1} parent=79 // pred_check
          %p1378 = pneg %p439
        $region90: #{section_model_forward.1} parent=79 // pred_check_branch
          %1380 = sbr.rel (%p1378) target = $region92
        $region91: #{section_model_forward.1} parent=79 // pred_region
          %s1382 = ssub.s32 16, 16
          %1383 = vsyncadd %s1375, %s1382
          %s1384 = smul.addr %s33, 16
          %s1385 = scalar_lea.hbm %s15, %s1384
          %s1387 = sshll.u32 %s1377, 4
          %s1388 = int_to_ptr.vmem [resolvable:$true] %s1387
          %1390 = dma.vmem_to_hbm [thread:$0]  %s1388, 16, %s1385, %s1375
        $region92: #{section_model_forward.1} parent=79 // pred_fallthru
          _
      $region80: #{section_model_forward.1} parent=5 // pred_fallthru
        _
      %p1391 = scmp.le.s32.totalorder 2, %s24
      // Predicated region
      $region93: #{section_model_forward.1} parent=5 // pred_check
        %p1392 = pneg %p1391
      $region94: #{section_model_forward.1} parent=5 // pred_check_branch
        %1394 = sbr.rel (%p1392) target = $region96
      $region95: #{section_model_forward.1} parent=5 // pred_region
        %s1395 = ssub.s32 %s24, 2
        // Predicated region
        $region97: #{section_model_forward.1} parent=95 // pred_check
          %p1396 = pneg %p445
        $region98: #{section_model_forward.1} parent=95 // pred_check_branch
          %1398 = sbr.rel (%p1396) target = $region100
        $region99: #{section_model_forward.1} parent=95 // pred_region
          %s1399 = sand.u32 %s430, 1
          %s1400 = scalar_lea.sflag [#allocation4], %s1399
          %s1401 = sand.u32 %s430, 1
          %s1402 = scalar_lea.vmem [#allocation3], %s1401
          %1403 = dma.done %s1400, 16
        $region100: #{section_model_forward.1} parent=95 // pred_fallthru
          _
      $region96: #{section_model_forward.1} parent=5 // pred_fallthru
        _
    $region6: #{section_model_forward.1} parent=1 // loop_footer
      %s28 = sadd.s32 1, %s24
    $region7: #{section_model_forward.1} parent=1 // loop_footer_branch
      %23 = sbr.rel target = $region3
    $region8: #{section_model_forward.1} parent=1 // loop_exit
      _
    %1404 = vsyncpa [#allocation4], 1
    %s1405 = scalar_lea.sflag [#allocation4], 1
    %1406 = vsyncpa %s1405, 1

</llo_original>
